<compile_context>
chip_gen: v5e
topology: v5e:2x2
jax: 0.10.0
libtpu: 0.0.40
codegen_flags: <defaults>
</compile_context>

<pallas_src>
import functools

import jax
import jax.numpy as jnp
from jax.experimental import pallas as pl
from jax.experimental.pallas import tpu as pltpu

NEG_SLOPE = 0.01  # torch.nn.LeakyReLU default
BN_EPS = 1e-5     # torch.nn.BatchNorm2d default


def _leaky(v):
    return jnp.where(v > 0, v, NEG_SLOPE * v)


def _fold_bn(gamma, beta, mean, var, eps=BN_EPS):
    """Eval-mode BatchNorm2d -> per-channel (scale, bias)."""
    s = gamma / jnp.sqrt(var + eps)
    return s, beta - mean * s


def _residual_kernel(x_ref, xt_ref, xb_ref, w1_ref, b1_ref, w3_ref, b2_ref,
                     o_ref):
    """One (batch, row-block) tile of the residual block.

    x_ref  : (1, TH, W, C)  input rows of this tile (NHWC)
    xt_ref : (1, 1,  W, C)  row just above the tile (clamped at image top)
    xb_ref : (1, 1,  W, C)  row just below the tile (clamped at image bottom)
    w1_ref : (C, Cmid)      1x1 conv weight, BN1 scale folded (compute dtype)
    b1_ref : (1, Cmid)      folded BN1 bias (f32)
    w3_ref : (9*Cmid, C)    3x3 conv weight, (kh,kw,cin) flattened, BN2 folded
    b2_ref : (1, C)         folded BN2 bias (f32)
    o_ref  : (1, TH, W, C)  output rows of this tile
    """
    _, TH, W, C = x_ref.shape
    Cmid = w1_ref.shape[1]
    cdt = w1_ref.dtype           # matmul input dtype (bf16 default, f32 opt.)
    P = TH * W                   # pixels in this tile
    R = (TH + 2) * W             # pixels incl. one halo row above and below

    # Flatten to 2-D: rows on sublanes, channels on lanes.
    x = x_ref[...].reshape(P, C)
    xt = xt_ref[...].reshape(W, C)
    xb = xb_ref[...].reshape(W, C)
    xfull = jnp.concatenate([xt, x, xb], axis=0)            # (R, C)

    # ---- Conv1x1 (channel matmul) + BN1 bias + LeakyReLU --------------------
    h = jnp.dot(xfull.astype(cdt), w1_ref[...],
                preferred_element_type=jnp.float32)          # (R, Cmid) f32
    h = _leaky(h + b1_ref[...])

    # Conv3x3 pad=1 zero padding: halo rows outside the image must be zero.
    i = pl.program_id(1)
    ridx = jax.lax.broadcasted_iota(jnp.int32, (R, 1), 0)
    outside = ((ridx < W) & (i == 0)) | (
        (ridx >= (TH + 1) * W) & (i == pl.num_programs(1) - 1))
    h = jnp.where(outside, 0.0, h).astype(cdt)

    # One zero element front/back so all nine tap slices stay in range.
    zrow = jnp.zeros((1, Cmid), cdt)
    hp = jnp.concatenate([zrow, h, zrow], axis=0)            # (R + 2, Cmid)

    # Horizontal validity of each output pixel (flattened column index).
    col = jax.lax.broadcasted_iota(jnp.int32, (P, 1), 0) % W
    left_ok = col > 0            # tap kw=0 reads column c-1
    right_ok = col < (W - 1)     # tap kw=2 reads column c+1

    # ---- Conv3x3: im2col -> ONE MXU matmul with K = 9*Cmid ------------------
    # Output pixel p reads hp[p + kh*W + kw] for tap (kh, kw).
    taps = []
    for kh in range(3):
        for kw in range(3):
            s = kh * W + kw
            t = hp[s:s + P, :]
            if kw == 0:
                t = jnp.where(left_ok, t, 0).astype(cdt)
            elif kw == 2:
                t = jnp.where(right_ok, t, 0).astype(cdt)
            taps.append(t)
    patch = jnp.concatenate(taps, axis=-1)                   # (P, 9*Cmid)
    y = jnp.dot(patch, w3_ref[...], preferred_element_type=jnp.float32)
    y = _leaky(y + b2_ref[...])                              # (P, C) f32

    # ---- residual add (f32) + store ------------------------------------------
    out = x.astype(jnp.float32) + y
    o_ref[...] = out.reshape(1, TH, W, C).astype(o_ref.dtype)


def _pick_row_block(H, W, C, Cmid, budget_bytes=4 * 1024 * 1024):
    """Largest divisor of H whose per-tile activation footprint fits budget."""
    per_row = 4 * W * (3 * C + 14 * Cmid)   # x/out/xfull + h/hp/patch (approx)
    th = max(1, min(H, budget_bytes // max(per_row, 1)))
    while H % th:
        th -= 1
    return th


@functools.partial(jax.jit, static_argnames=("block_h", "compute_dtype"))
def residual_layer_nhwc(x, w1_oihw, bn1, w3_oihw, bn2, *, block_h=None,
                        compute_dtype=jnp.bfloat16):
    """Residual block, NHWC in / NHWC out (preferred, no layout transposes)."""
    N, H, W, C = x.shape
    Cmid = w1_oihw.shape[0]
    assert w1_oihw.shape == (Cmid, C, 1, 1)
    assert w3_oihw.shape == (C, Cmid, 3, 3)

    if block_h is None:
        block_h = _pick_row_block(H, W, C, Cmid)
    TH = int(block_h)
    while H % TH:
        TH -= 1

    # ---- host-side parameter prep (once per trace) ---------------------------
    s1, b1 = _fold_bn(*bn1)
    s2, b2 = _fold_bn(*bn2)
    # Fold BN1 scale into the 1x1 weight; layout (C, Cmid) for x @ w1.
    w1 = (w1_oihw[:, :, 0, 0].T * s1[None, :]).astype(compute_dtype)
    # Fold BN2 scale into the 3x3 weight; (kh, kw, cin, cout) flattened to
    # (9*Cmid, C), matching the kernel's (kh-major, kw, cin) im2col order.
    w3_hwio = jnp.transpose(w3_oihw, (2, 3, 1, 0))
    w3 = (w3_hwio * s2[None, None, None, :]).reshape(9 * Cmid, C)
    w3 = w3.astype(compute_dtype)
    b1 = b1.reshape(1, Cmid).astype(jnp.float32)
    b2 = b2.reshape(1, C).astype(jnp.float32)

    grid = (N, H // TH)

    def x_map(n, i):
        return (n, i, 0, 0)

    def top_map(n, i):   # row above the tile (clamped; masked in-kernel at top)
        return (n, jnp.maximum(i * TH - 1, 0), 0, 0)

    def bot_map(n, i):   # row below the tile (clamped; masked at the bottom)
        return (n, jnp.minimum(i * TH + TH, H - 1), 0, 0)

    def const_map(n, i):
        return (0, 0)

    return pl.pallas_call(
        _residual_kernel,
        out_shape=jax.ShapeDtypeStruct((N, H, W, C), x.dtype),
        grid=grid,
        in_specs=[
            pl.BlockSpec((1, TH, W, C), x_map),
            pl.BlockSpec((1, 1, W, C), top_map),
            pl.BlockSpec((1, 1, W, C), bot_map),
            pl.BlockSpec((C, Cmid), const_map),
            pl.BlockSpec((1, Cmid), const_map),
            pl.BlockSpec((9 * Cmid, C), const_map),
            pl.BlockSpec((1, C), const_map),
        ],
        out_specs=pl.BlockSpec((1, TH, W, C), x_map),
        compiler_params=pltpu.CompilerParams(
            dimension_semantics=("parallel", "parallel"),
            vmem_limit_bytes=32 * 1024 * 1024,
        ),
    )(x, x, x, w1, b1, w3, b2)


def residual_layer(x_nchw, w1_oihw, bn1, w3_oihw, bn2, **kw):
    """PyTorch-parity wrapper: NCHW in / NCHW out.

    Prefer `residual_layer_nhwc` in an NHWC end-to-end model: each transpose
    here is a full HBM round trip of the activation tensor.
    """
    x = jnp.transpose(x_nchw, (0, 2, 3, 1))
    y = residual_layer_nhwc(x, w1_oihw, bn1, w3_oihw, bn2, **kw)
    return jnp.transpose(y, (0, 3, 1, 2))


def _reference(x_nchw, w1_oihw, bn1, w3_oihw, bn2):
    """Pure-JAX f32 reference using lax.conv (eval-mode BN)."""
    x = jnp.transpose(x_nchw, (0, 2, 3, 1))
    dn = ('NHWC', 'HWIO', 'NHWC')
    s1, b1 = _fold_bn(*bn1)
    s2, b2 = _fold_bn(*bn2)
    w1 = jnp.transpose(w1_oihw, (2, 3, 1, 0))
    w3 = jnp.transpose(w3_oihw, (2, 3, 1, 0))
    h = jax.lax.conv_general_dilated(x, w1, (1, 1), 'VALID',
                                     dimension_numbers=dn)
    h = _leaky(h * s1 + b1)
    y = jax.lax.conv_general_dilated(h, w3, (1, 1), ((1, 1), (1, 1)),
                                     dimension_numbers=dn)
    y = _leaky(y * s2 + b2)
    return jnp.transpose(x + y, (0, 3, 1, 2))


if __name__ == "__main__":
    key = jax.random.PRNGKey(0)
    N, C, H, W = 2, 4, 16, 16
    Cmid = C // 2
    ks = jax.random.split(key, 11)

    x = jax.random.normal(ks[0], (N, C, H, W), jnp.float32)

    # Conv weights in PyTorch OIHW layout (bias=False).
    w1_oihw = 0.5 * jax.random.normal(ks[1], (Cmid, C, 1, 1), jnp.float32)
    w3_oihw = 0.3 * jax.random.normal(ks[2], (C, Cmid, 3, 3), jnp.float32)

    # BatchNorm params / running stats (eval mode), deterministic.
    g1 = 1.0 + 0.1 * jax.random.normal(ks[3], (Cmid,), jnp.float32)
    be1 = 0.1 * jax.random.normal(ks[4], (Cmid,), jnp.float32)
    m1 = 0.1 * jax.random.normal(ks[5], (Cmid,), jnp.float32)
    v1 = jax.nn.softplus(jax.random.normal(ks[6], (Cmid,), jnp.float32)) + 0.5
    g2 = 1.0 + 0.1 * jax.random.normal(ks[7], (C,), jnp.float32)
    be2 = 0.1 * jax.random.normal(ks[8], (C,), jnp.float32)
    m2 = 0.1 * jax.random.normal(ks[9], (C,), jnp.float32)
    v2 = jax.nn.softplus(jax.random.normal(ks[10], (C,), jnp.float32)) + 0.5

    bn1 = (g1, be1, m1, v1)
    bn2 = (g2, be2, m2, v2)

    # TODO(synk): training-mode BatchNorm (batch statistics + running-stat
    # update) is not implemented; eval-mode BN is folded into the conv weights.

    ref = _reference(x, w1_oihw, bn1, w3_oihw, bn2)

    # f32 matmul path: matches the f32 reference tightly (same math).
    out_f32 = residual_layer(x, w1_oihw, bn1, w3_oihw, bn2,
                             block_h=8, compute_dtype=jnp.float32)
    out_f32 = jax.block_until_ready(out_f32)
    assert out_f32.shape == (N, C, H, W)
    assert jnp.allclose(out_f32, ref, atol=1e-4, rtol=1e-4), "f32 mismatch"

    # bf16-input / f32-accumulate path (perf default for v5e/v6e/v7x MXU).
    out_bf16 = residual_layer(x, w1_oihw, bn1, w3_oihw, bn2, block_h=8)
    out_bf16 = jax.block_until_ready(out_bf16)
    assert out_bf16.shape == (N, C, H, W)
    assert jnp.allclose(out_bf16, ref, atol=1e-1, rtol=1e-1), "bf16 mismatch"

    print("KERNEL_OK")
</pallas_src>

<mosaic_0001>
module attributes {stable_mosaic.version = 11 : i64} {
  func.func @_residual_kernel(%arg0: i32, %arg1: i32, %arg2: memref<1x8x16x4xf32, #tpu.memory_space<vmem>>, %arg3: memref<1x1x16x4xf32, #tpu.memory_space<vmem>>, %arg4: memref<1x1x16x4xf32, #tpu.memory_space<vmem>>, %arg5: memref<4x2xf32, #tpu.memory_space<vmem>>, %arg6: memref<1x2xf32, #tpu.memory_space<vmem>>, %arg7: memref<18x4xf32, #tpu.memory_space<vmem>>, %arg8: memref<1x4xf32, #tpu.memory_space<vmem>>, %arg9: memref<1x8x16x4xf32, #tpu.memory_space<vmem>>) attributes {dimension_semantics = [#tpu.dimension_semantics<parallel>, #tpu.dimension_semantics<parallel>], iteration_bounds = array<i64: 2, 2>, scalar_prefetch = 0 : i64, scratch_operands = 0 : i64, tpu.core_type = #tpu.core_type<tc>, window_params = [{transform_indices = @transform_0, window_bounds = array<i64: 1, 8, 16, 4>}, {transform_indices = @transform_1, window_bounds = array<i64: 1, 1, 16, 4>}, {transform_indices = @transform_2, window_bounds = array<i64: 1, 1, 16, 4>}, {pipeline_mode = #tpu.pipeline_mode<synchronous>, transform_indices = @transform_3, window_bounds = array<i64: 4, 2>}, {pipeline_mode = #tpu.pipeline_mode<synchronous>, transform_indices = @transform_4, window_bounds = array<i64: 1, 2>}, {pipeline_mode = #tpu.pipeline_mode<synchronous>, transform_indices = @transform_5, window_bounds = array<i64: 18, 4>}, {pipeline_mode = #tpu.pipeline_mode<synchronous>, transform_indices = @transform_6, window_bounds = array<i64: 1, 4>}, {transform_indices = @transform_7, window_bounds = array<i64: 1, 8, 16, 4>}]} {
    %c0 = arith.constant 0 : index
    %c0_0 = arith.constant 0 : index
    %c0_1 = arith.constant 0 : index
    %c0_2 = arith.constant 0 : index
    %0 = vector.load %arg2[%c0, %c0_0, %c0_1, %c0_2] : memref<1x8x16x4xf32, #tpu.memory_space<vmem>>, vector<1x8x16x4xf32>
    %1 = vector.shape_cast %0 : vector<1x8x16x4xf32> to vector<128x4xf32>
    %c0_3 = arith.constant 0 : index
    %c0_4 = arith.constant 0 : index
    %c0_5 = arith.constant 0 : index
    %c0_6 = arith.constant 0 : index
    %2 = vector.load %arg3[%c0_3, %c0_4, %c0_5, %c0_6] : memref<1x1x16x4xf32, #tpu.memory_space<vmem>>, vector<1x1x16x4xf32>
    %3 = vector.shape_cast %2 : vector<1x1x16x4xf32> to vector<16x4xf32>
    %c0_7 = arith.constant 0 : index
    %c0_8 = arith.constant 0 : index
    %c0_9 = arith.constant 0 : index
    %c0_10 = arith.constant 0 : index
    %4 = vector.load %arg4[%c0_7, %c0_8, %c0_9, %c0_10] : memref<1x1x16x4xf32, #tpu.memory_space<vmem>>, vector<1x1x16x4xf32>
    %5 = vector.shape_cast %4 : vector<1x1x16x4xf32> to vector<16x4xf32>
    %6 = tpu.concatenate %3, %1, %5 in 0 : vector<16x4xf32>, vector<128x4xf32>, vector<16x4xf32> -> vector<160x4xf32>
    %c0_11 = arith.constant 0 : index
    %c0_12 = arith.constant 0 : index
    %7 = vector.load %arg5[%c0_11, %c0_12] : memref<4x2xf32, #tpu.memory_space<vmem>>, vector<4x2xf32>
    %cst = arith.constant dense<0.000000e+00> : vector<160x2xf32>
    %8 = tpu.matmul %6, %7, %cst {dimension_numbers = #tpu.dot_dimension_numbers<[1], [0], [0], [1], [0, 0, 1, 1], [], []>} : vector<160x4xf32>, vector<4x2xf32>, vector<160x2xf32> -> vector<160x2xf32>
    %c0_13 = arith.constant 0 : index
    %c0_14 = arith.constant 0 : index
    %9 = vector.load %arg6[%c0_13, %c0_14] : memref<1x2xf32, #tpu.memory_space<vmem>>, vector<1x2xf32>
    %10 = vector.broadcast %9 : vector<1x2xf32> to vector<160x2xf32>
    %11 = arith.addf %8, %10 : vector<160x2xf32>
    %cst_15 = arith.constant 0.000000e+00 : f32
    %12 = vector.broadcast %cst_15 : f32 to vector<160x2xf32>
    %13 = arith.cmpf ogt, %11, %12 : vector<160x2xf32>
    %cst_16 = arith.constant 0.00999999977 : f32
    %14 = vector.broadcast %cst_16 : f32 to vector<160x2xf32>
    %15 = arith.mulf %14, %11 : vector<160x2xf32>
    %16 = arith.select %13, %11, %15 : vector<160x2xi1>, vector<160x2xf32>
    %17 = tpu.iota {dimensions = array<i32: 0>} : vector<160x1xi32>
    %c16_i32 = arith.constant 16 : i32
    %18 = vector.broadcast %c16_i32 : i32 to vector<160x1xi32>
    %19 = arith.cmpi slt, %17, %18 : vector<160x1xi32>
    %c0_i32 = arith.constant 0 : i32
    %20 = arith.cmpi eq, %arg1, %c0_i32 : i32
    %21 = vector.broadcast %20 : i1 to vector<160x1xi1>
    %22 = arith.andi %19, %21 : vector<160x1xi1>
    %c144_i32 = arith.constant 144 : i32
    %23 = vector.broadcast %c144_i32 : i32 to vector<160x1xi32>
    %24 = arith.cmpi sge, %17, %23 : vector<160x1xi32>
    %c1_i32 = arith.constant 1 : i32
    %25 = arith.cmpi eq, %arg1, %c1_i32 : i32
    %26 = vector.broadcast %25 : i1 to vector<160x1xi1>
    %27 = arith.andi %24, %26 : vector<160x1xi1>
    %28 = arith.ori %22, %27 : vector<160x1xi1>
    %cst_17 = arith.constant 0.000000e+00 : f32
    %29 = vector.shape_cast %28 : vector<160x1xi1> to vector<160x1xi1>
    %30 = vector.broadcast %29 : vector<160x1xi1> to vector<160x2xi1>
    %31 = vector.broadcast %cst_17 : f32 to vector<160x2xf32>
    %32 = arith.select %30, %31, %16 : vector<160x2xi1>, vector<160x2xf32>
    %cst_18 = arith.constant 0.000000e+00 : f32
    %33 = vector.broadcast %cst_18 : f32 to vector<1x2xf32>
    %34 = tpu.concatenate %33, %32, %33 in 0 : vector<1x2xf32>, vector<160x2xf32>, vector<1x2xf32> -> vector<162x2xf32>
    %35 = tpu.iota {dimensions = array<i32: 0>} : vector<128x1xi32>
    %c16_i32_19 = arith.constant 16 : i32
    %c0_i32_20 = arith.constant 0 : i32
    %36 = arith.cmpi eq, %c16_i32_19, %c0_i32_20 : i32
    %c1_i32_21 = arith.constant 1 : i32
    %37 = arith.select %36, %c1_i32_21, %c16_i32_19 : i32
    %38 = vector.broadcast %37 : i32 to vector<128x1xi32>
    %39 = arith.remsi %35, %38 : vector<128x1xi32>
    %c0_i32_22 = arith.constant 0 : i32
    %40 = vector.broadcast %c0_i32_22 : i32 to vector<128x1xi32>
    %41 = arith.cmpi ne, %39, %40 : vector<128x1xi32>
    %c0_i32_23 = arith.constant 0 : i32
    %42 = vector.broadcast %c0_i32_23 : i32 to vector<128x1xi32>
    %43 = arith.cmpi slt, %39, %42 : vector<128x1xi32>
    %c0_i32_24 = arith.constant 0 : i32
    %44 = arith.cmpi slt, %37, %c0_i32_24 : i32
    %45 = vector.broadcast %44 : i1 to vector<128x1xi1>
    %46 = vector.broadcast %45 : vector<128x1xi1> to vector<128x1xi1>
    %47 = arith.xori %43, %46 : vector<128x1xi1>
    %48 = arith.andi %47, %41 : vector<128x1xi1>
    %49 = vector.broadcast %37 : i32 to vector<128x1xi32>
    %50 = arith.addi %39, %49 : vector<128x1xi32>
    %51 = arith.select %48, %50, %39 : vector<128x1xi1>, vector<128x1xi32>
    %c0_i32_25 = arith.constant 0 : i32
    %52 = vector.broadcast %c0_i32_25 : i32 to vector<128x1xi32>
    %53 = arith.cmpi sgt, %51, %52 : vector<128x1xi32>
    %c15_i32 = arith.constant 15 : i32
    %54 = vector.broadcast %c15_i32 : i32 to vector<128x1xi32>
    %55 = arith.cmpi slt, %51, %54 : vector<128x1xi32>
    %56 = vector.extract_strided_slice %34 {offsets = [0, 0], sizes = [128, 2], strides = [1, 1]} : vector<162x2xf32> to vector<128x2xf32>
    %c0_i32_26 = arith.constant 0 : i32
    %57 = arith.sitofp %c0_i32_26 : i32 to f32
    %58 = vector.shape_cast %53 : vector<128x1xi1> to vector<128x1xi1>
    %59 = vector.broadcast %58 : vector<128x1xi1> to vector<128x2xi1>
    %60 = vector.broadcast %57 : f32 to vector<128x2xf32>
    %61 = arith.select %59, %56, %60 : vector<128x2xi1>, vector<128x2xf32>
    %62 = vector.extract_strided_slice %34 {offsets = [1, 0], sizes = [128, 2], strides = [1, 1]} : vector<162x2xf32> to vector<128x2xf32>
    %63 = vector.extract_strided_slice %34 {offsets = [2, 0], sizes = [128, 2], strides = [1, 1]} : vector<162x2xf32> to vector<128x2xf32>
    %c0_i32_27 = arith.constant 0 : i32
    %64 = arith.sitofp %c0_i32_27 : i32 to f32
    %65 = vector.shape_cast %55 : vector<128x1xi1> to vector<128x1xi1>
    %66 = vector.broadcast %65 : vector<128x1xi1> to vector<128x2xi1>
    %67 = vector.broadcast %64 : f32 to vector<128x2xf32>
    %68 = arith.select %66, %63, %67 : vector<128x2xi1>, vector<128x2xf32>
    %69 = vector.extract_strided_slice %34 {offsets = [16, 0], sizes = [128, 2], strides = [1, 1]} : vector<162x2xf32> to vector<128x2xf32>
    %c0_i32_28 = arith.constant 0 : i32
    %70 = arith.sitofp %c0_i32_28 : i32 to f32
    %71 = vector.shape_cast %53 : vector<128x1xi1> to vector<128x1xi1>
    %72 = vector.broadcast %71 : vector<128x1xi1> to vector<128x2xi1>
    %73 = vector.broadcast %70 : f32 to vector<128x2xf32>
    %74 = arith.select %72, %69, %73 : vector<128x2xi1>, vector<128x2xf32>
    %75 = vector.extract_strided_slice %34 {offsets = [17, 0], sizes = [128, 2], strides = [1, 1]} : vector<162x2xf32> to vector<128x2xf32>
    %76 = vector.extract_strided_slice %34 {offsets = [18, 0], sizes = [128, 2], strides = [1, 1]} : vector<162x2xf32> to vector<128x2xf32>
    %c0_i32_29 = arith.constant 0 : i32
    %77 = arith.sitofp %c0_i32_29 : i32 to f32
    %78 = vector.shape_cast %55 : vector<128x1xi1> to vector<128x1xi1>
    %79 = vector.broadcast %78 : vector<128x1xi1> to vector<128x2xi1>
    %80 = vector.broadcast %77 : f32 to vector<128x2xf32>
    %81 = arith.select %79, %76, %80 : vector<128x2xi1>, vector<128x2xf32>
    %82 = vector.extract_strided_slice %34 {offsets = [32, 0], sizes = [128, 2], strides = [1, 1]} : vector<162x2xf32> to vector<128x2xf32>
    %c0_i32_30 = arith.constant 0 : i32
    %83 = arith.sitofp %c0_i32_30 : i32 to f32
    %84 = vector.shape_cast %53 : vector<128x1xi1> to vector<128x1xi1>
    %85 = vector.broadcast %84 : vector<128x1xi1> to vector<128x2xi1>
    %86 = vector.broadcast %83 : f32 to vector<128x2xf32>
    %87 = arith.select %85, %82, %86 : vector<128x2xi1>, vector<128x2xf32>
    %88 = vector.extract_strided_slice %34 {offsets = [33, 0], sizes = [128, 2], strides = [1, 1]} : vector<162x2xf32> to vector<128x2xf32>
    %89 = vector.extract_strided_slice %34 {offsets = [34, 0], sizes = [128, 2], strides = [1, 1]} : vector<162x2xf32> to vector<128x2xf32>
    %c0_i32_31 = arith.constant 0 : i32
    %90 = arith.sitofp %c0_i32_31 : i32 to f32
    %91 = vector.shape_cast %55 : vector<128x1xi1> to vector<128x1xi1>
    %92 = vector.broadcast %91 : vector<128x1xi1> to vector<128x2xi1>
    %93 = vector.broadcast %90 : f32 to vector<128x2xf32>
    %94 = arith.select %92, %89, %93 : vector<128x2xi1>, vector<128x2xf32>
    %95 = tpu.concatenate %61, %62, %68, %74, %75, %81, %87, %88, %94 in 1 : vector<128x2xf32>, vector<128x2xf32>, vector<128x2xf32>, vector<128x2xf32>, vector<128x2xf32>, vector<128x2xf32>, vector<128x2xf32>, vector<128x2xf32>, vector<128x2xf32> -> vector<128x18xf32>
    %c0_32 = arith.constant 0 : index
    %c0_33 = arith.constant 0 : index
    %96 = vector.load %arg7[%c0_32, %c0_33] : memref<18x4xf32, #tpu.memory_space<vmem>>, vector<18x4xf32>
    %cst_34 = arith.constant dense<0.000000e+00> : vector<128x4xf32>
    %97 = tpu.matmul %95, %96, %cst_34 {dimension_numbers = #tpu.dot_dimension_numbers<[1], [0], [0], [1], [0, 0, 1, 1], [], []>} : vector<128x18xf32>, vector<18x4xf32>, vector<128x4xf32> -> vector<128x4xf32>
    %c0_35 = arith.constant 0 : index
    %c0_36 = arith.constant 0 : index
    %98 = vector.load %arg8[%c0_35, %c0_36] : memref<1x4xf32, #tpu.memory_space<vmem>>, vector<1x4xf32>
    %99 = vector.broadcast %98 : vector<1x4xf32> to vector<128x4xf32>
    %100 = arith.addf %97, %99 : vector<128x4xf32>
    %cst_37 = arith.constant 0.000000e+00 : f32
    %101 = vector.broadcast %cst_37 : f32 to vector<128x4xf32>
    %102 = arith.cmpf ogt, %100, %101 : vector<128x4xf32>
    %cst_38 = arith.constant 0.00999999977 : f32
    %103 = vector.broadcast %cst_38 : f32 to vector<128x4xf32>
    %104 = arith.mulf %103, %100 : vector<128x4xf32>
    %105 = arith.select %102, %100, %104 : vector<128x4xi1>, vector<128x4xf32>
    %106 = arith.addf %1, %105 : vector<128x4xf32>
    %107 = vector.shape_cast %106 : vector<128x4xf32> to vector<1x8x16x4xf32>
    %c0_39 = arith.constant 0 : index
    %c0_40 = arith.constant 0 : index
    %c0_41 = arith.constant 0 : index
    %c0_42 = arith.constant 0 : index
    %108 = vector.load %arg9[%c0_39, %c0_40, %c0_41, %c0_42] : memref<1x8x16x4xf32, #tpu.memory_space<vmem>>, vector<1x8x16x4xf32>
    tpu.vector_store %arg9[%c0_39, %c0_40, %c0_41, %c0_42], %107 {strides = array<i32>} : memref<1x8x16x4xf32, #tpu.memory_space<vmem>>, vector<1x8x16x4xf32>,
    return
  }
  func.func @transform_0(%arg0: i32, %arg1: i32) -> (i32, i32, i32, i32) {
    %c0_i32 = arith.constant 0 : i32
    %c0_i32_0 = arith.constant 0 : i32
    %c0_i32_1 = arith.constant 0 : i32
    return %arg0, %arg1, %c0_i32, %c0_i32_0 : i32, i32, i32, i32
  }
  func.func @transform_1(%arg0: i32, %arg1: i32) -> (i32, i32, i32, i32) {
    %c8_i32 = arith.constant 8 : i32
    %0 = arith.muli %arg1, %c8_i32 : i32
    %c1_i32 = arith.constant 1 : i32
    %1 = arith.subi %0, %c1_i32 : i32
    %c0_i32 = arith.constant 0 : i32
    %2 = arith.maxsi %1, %c0_i32 : i32
    %c0_i32_0 = arith.constant 0 : i32
    %c0_i32_1 = arith.constant 0 : i32
    %c0_i32_2 = arith.constant 0 : i32
    return %arg0, %2, %c0_i32_0, %c0_i32_1 : i32, i32, i32, i32
  }
  func.func @transform_2(%arg0: i32, %arg1: i32) -> (i32, i32, i32, i32) {
    %c8_i32 = arith.constant 8 : i32
    %0 = arith.muli %arg1, %c8_i32 : i32
    %c8_i32_0 = arith.constant 8 : i32
    %1 = arith.addi %0, %c8_i32_0 : i32
    %c15_i32 = arith.constant 15 : i32
    %2 = arith.minsi %1, %c15_i32 : i32
    %c0_i32 = arith.constant 0 : i32
    %c0_i32_1 = arith.constant 0 : i32
    %c0_i32_2 = arith.constant 0 : i32
    return %arg0, %2, %c0_i32, %c0_i32_1 : i32, i32, i32, i32
  }
  func.func @transform_3(%arg0: i32, %arg1: i32) -> (i32, i32) {
    %c0_i32 = arith.constant 0 : i32
    %c0_i32_0 = arith.constant 0 : i32
    %c0_i32_1 = arith.constant 0 : i32
    return %c0_i32, %c0_i32_0 : i32, i32
  }
  func.func @transform_4(%arg0: i32, %arg1: i32) -> (i32, i32) {
    %c0_i32 = arith.constant 0 : i32
    %c0_i32_0 = arith.constant 0 : i32
    %c0_i32_1 = arith.constant 0 : i32
    return %c0_i32, %c0_i32_0 : i32, i32
  }
  func.func @transform_5(%arg0: i32, %arg1: i32) -> (i32, i32) {
    %c0_i32 = arith.constant 0 : i32
    %c0_i32_0 = arith.constant 0 : i32
    %c0_i32_1 = arith.constant 0 : i32
    return %c0_i32, %c0_i32_0 : i32, i32
  }
  func.func @transform_6(%arg0: i32, %arg1: i32) -> (i32, i32) {
    %c0_i32 = arith.constant 0 : i32
    %c0_i32_0 = arith.constant 0 : i32
    %c0_i32_1 = arith.constant 0 : i32
    return %c0_i32, %c0_i32_0 : i32, i32
  }
  func.func @transform_7(%arg0: i32, %arg1: i32) -> (i32, i32, i32, i32) {
    %c0_i32 = arith.constant 0 : i32
    %c0_i32_0 = arith.constant 0 : i32
    %c0_i32_1 = arith.constant 0 : i32
    return %arg0, %arg1, %c0_i32, %c0_i32_0 : i32, i32, i32, i32
  }
}

</mosaic_0001>

<llo_original>
// kernel: residual_layer_nhwc.1
$region0: #{residual_layer_nhwc.1}
  #allocation0 [shape = 'u32[]', space=smem, size = 0x4, offset = 0x4, fixed_abs, tag = 'smem constant byte address 0x4 - core index']
  #allocation1 [shape = 'u32[72,128]{1,0:T(1,128)}', space=vmem, size = 0x9000, scoped, tag = 'internal scratch']
  %s0 = inlined_call_operand.vmem [shape: f32[2,16,16,4], index: 0, kind: input, shape index: {}, may-alias: {0,1,2}]
  %s1 = inlined_call_operand.vmem [shape: f32[2,16,16,4], index: 1, kind: input, shape index: {}, may-alias: {0,1,2}]
  %s2 = inlined_call_operand.vmem [shape: f32[2,16,16,4], index: 2, kind: input, shape index: {}, may-alias: {0,1,2}]
  %s3 = inlined_call_operand.vmem [shape: f32[4,2], index: 3, kind: input, shape index: {}]
  %s4 = inlined_call_operand.vmem [shape: f32[1,2], index: 4, kind: input, shape index: {}]
  %s5 = inlined_call_operand.vmem [shape: f32[18,4], index: 5, kind: input, shape index: {}]
  %s6 = inlined_call_operand.vmem [shape: f32[1,4], index: 6, kind: input, shape index: {}]
  %s7 = inlined_call_operand.vmem [shape: f32[2,16,16,4], index: 7, kind: output, shape index: {}]
  %s8 = sld [smem:[#allocation0]]
  $region61: #{residual_layer_nhwc.1} parent=0
    _
  %s10 = ssub.s32 1, %s8
  %s11 = scalar_select 0, %s10, %s8
  loop: start=0, step=1, limit=6
  $region2: #{residual_layer_nhwc.1} parent=0 // loop_pre_header
    _
  $region3: #{residual_layer_nhwc.1} parent=0 // loop_header
    %s13 = sphi 0, %s17
    %p14 = scmp.ge.s32.totalorder %s13, 6
    %s20 = sphi 0, %s32
    %s21 = sphi 0, %s28
    %s22 = sphi 0, %s20
    %s23 = sphi 0, %s21
    %s24 = sphi 0, %s22
    %s25 = sphi 0, %s23
    %s37 = sphi 0, %s39
    %s40 = sphi 0, %s37
    %s41 = sphi 0, %s40
    %s57 = sphi 0, %s41
    %s73 = sphi 0, %s75
    %s76 = sphi 0, %s73
    %s77 = sphi 0, %s76
    %s93 = sphi 0, %s77
    %s109 = sphi 0, %s111
    %s112 = sphi 0, %s109
    %s113 = sphi 0, %s112
    %s129 = sphi 0, %s113
    %s133 = sphi 0, %s133
    %s135 = sphi 0, %s133
    %s136 = sphi 0, %s135
    %s150 = sphi 0, %s136
    %s154 = sphi 0, %s154
    %s156 = sphi 0, %s154
    %s157 = sphi 0, %s156
    %s171 = sphi 0, %s157
    %s175 = sphi 0, %s175
    %s177 = sphi 0, %s175
    %s178 = sphi 0, %s177
    %s192 = sphi 0, %s178
    %s196 = sphi 0, %s196
    %s198 = sphi 0, %s196
    %s199 = sphi 0, %s198
    %s213 = sphi 0, %s199
    %s221 = sphi 0, %s223
    %s224 = sphi 0, %s221
    %s225 = sphi 0, %s224
    %s241 = sphi 0, %s225
  $region4: #{residual_layer_nhwc.1} parent=0 // loop_header_branch
    %16 = sbr.rel (%p14) target = $region8
  $region5: #{residual_layer_nhwc.1} parent=0 // loop_body
    %s18 = ssub.s32 %s13, 1
    %s19 = ssub.s32 %s13, 2
    %s26 = sadd.s32 1, %s21
    %p27 = scmp.ge.s32.totalorder %s26, 2
    %s28 = scalar_select %p27, 0, %s26
    %s29 = sadd.s32 1, %s20
    %s30 = scalar_select %p27, %s29, %s20
    %p31 = scmp.ge.s32.totalorder %s30, 2
    %s32 = scalar_select %p31, 0, %s30
    %s33 = ssub.s32 %s20, %s32
    %s34 = ssub.s32 %s21, %s28
    %s35 = sor.u32 %s33, %s34
    %p36 = scmp.eq.s32.totalorder %s35, 0
    %s38 = sadd.s32 %s37, 1
    %s39 = scalar_select %p36, %s37, %s38
    %p42 = pneg %p36
    %p43 = scmp.eq.s32.totalorder %s13, 3
    %p44 = por %p42, %p43
    %p45 = scmp.ne.s32.totalorder %s37, %s40
    %p46 = scmp.eq.s32.totalorder %s13, 0
    %p47 = por %p45, %p46
    %p48 = scmp.ne.s32.totalorder %s37, %s40
    %p49 = scmp.eq.s32.totalorder %s18, 3
    %p50 = por %p48, %p49
    %p51 = scmp.ne.s32.totalorder %s40, %s41
    %p52 = scmp.eq.s32.totalorder %s18, 0
    %p53 = por %p51, %p52
    %p54 = scmp.ne.s32.totalorder %s40, %s41
    %p55 = scmp.eq.s32.totalorder %s19, 3
    %p56 = por %p54, %p55
    %p58 = scmp.ne.s32.totalorder %s41, %s57
    %p59 = scmp.eq.s32.totalorder %s19, 0
    %p60 = por %p58, %p59
    %s61 = smul.u32 %s21, 8
    %s62 = ssub.s32 %s61, 1
    %p63 = scmp.gt.s32.totalorder %s62, 0
    %s64 = scalar_select %p63, %s62, 0
    %s65 = smul.u32 %s28, 8
    %s66 = ssub.s32 %s65, 1
    %p67 = scmp.gt.s32.totalorder %s66, 0
    %s68 = scalar_select %p67, %s66, 0
    %s69 = ssub.s32 %s20, %s32
    %s70 = ssub.s32 %s64, %s68
    %s71 = sor.u32 %s69, %s70
    %p72 = scmp.eq.s32.totalorder %s71, 0
    %s74 = sadd.s32 %s73, 1
    %s75 = scalar_select %p72, %s73, %s74
    %p78 = pneg %p72
    %p79 = scmp.eq.s32.totalorder %s13, 3
    %p80 = por %p78, %p79
    %p81 = scmp.ne.s32.totalorder %s73, %s76
    %p82 = scmp.eq.s32.totalorder %s13, 0
    %p83 = por %p81, %p82
    %p84 = scmp.ne.s32.totalorder %s73, %s76
    %p85 = scmp.eq.s32.totalorder %s18, 3
    %p86 = por %p84, %p85
    %p87 = scmp.ne.s32.totalorder %s76, %s77
    %p88 = scmp.eq.s32.totalorder %s18, 0
    %p89 = por %p87, %p88
    %p90 = scmp.ne.s32.totalorder %s76, %s77
    %p91 = scmp.eq.s32.totalorder %s19, 3
    %p92 = por %p90, %p91
    %p94 = scmp.ne.s32.totalorder %s77, %s93
    %p95 = scmp.eq.s32.totalorder %s19, 0
    %p96 = por %p94, %p95
    %s97 = smul.u32 %s21, 8
    %s98 = sadd.s32 %s97, 8
    %p99 = scmp.lt.s32.totalorder %s98, 15
    %s100 = scalar_select %p99, %s98, 15
    %s101 = smul.u32 %s28, 8
    %s102 = sadd.s32 %s101, 8
    %p103 = scmp.lt.s32.totalorder %s102, 15
    %s104 = scalar_select %p103, %s102, 15
    %s105 = ssub.s32 %s20, %s32
    %s106 = ssub.s32 %s100, %s104
    %s107 = sor.u32 %s105, %s106
    %p108 = scmp.eq.s32.totalorder %s107, 0
    %s110 = sadd.s32 %s109, 1
    %s111 = scalar_select %p108, %s109, %s110
    %p114 = pneg %p108
    %p115 = scmp.eq.s32.totalorder %s13, 3
    %p116 = por %p114, %p115
    %p117 = scmp.ne.s32.totalorder %s109, %s112
    %p118 = scmp.eq.s32.totalorder %s13, 0
    %p119 = por %p117, %p118
    %p120 = scmp.ne.s32.totalorder %s109, %s112
    %p121 = scmp.eq.s32.totalorder %s18, 3
    %p122 = por %p120, %p121
    %p123 = scmp.ne.s32.totalorder %s112, %s113
    %p124 = scmp.eq.s32.totalorder %s18, 0
    %p125 = por %p123, %p124
    %p126 = scmp.ne.s32.totalorder %s112, %s113
    %p127 = scmp.eq.s32.totalorder %s19, 3
    %p128 = por %p126, %p127
    %p130 = scmp.ne.s32.totalorder %s113, %s129
    %p131 = scmp.eq.s32.totalorder %s19, 0
    %p132 = por %p130, %p131
    %s134 = sadd.s32 %s133, 1
    %p137 = scmp.eq.s32.totalorder %s13, 3
    %p138 = scmp.ne.s32.totalorder %s133, %s135
    %p139 = scmp.eq.s32.totalorder %s13, 0
    %p140 = por %p138, %p139
    %p141 = scmp.ne.s32.totalorder %s133, %s135
    %p142 = scmp.eq.s32.totalorder %s18, 3
    %p143 = por %p141, %p142
    %p144 = scmp.ne.s32.totalorder %s135, %s136
    %p145 = scmp.eq.s32.totalorder %s18, 0
    %p146 = por %p144, %p145
    %p147 = scmp.ne.s32.totalorder %s135, %s136
    %p148 = scmp.eq.s32.totalorder %s19, 3
    %p149 = por %p147, %p148
    %p151 = scmp.ne.s32.totalorder %s136, %s150
    %p152 = scmp.eq.s32.totalorder %s19, 0
    %p153 = por %p151, %p152
    %s155 = sadd.s32 %s154, 1
    %p158 = scmp.eq.s32.totalorder %s13, 3
    %p159 = scmp.ne.s32.totalorder %s154, %s156
    %p160 = scmp.eq.s32.totalorder %s13, 0
    %p161 = por %p159, %p160
    %p162 = scmp.ne.s32.totalorder %s154, %s156
    %p163 = scmp.eq.s32.totalorder %s18, 3
    %p164 = por %p162, %p163
    %p165 = scmp.ne.s32.totalorder %s156, %s157
    %p166 = scmp.eq.s32.totalorder %s18, 0
    %p167 = por %p165, %p166
    %p168 = scmp.ne.s32.totalorder %s156, %s157
    %p169 = scmp.eq.s32.totalorder %s19, 3
    %p170 = por %p168, %p169
    %p172 = scmp.ne.s32.totalorder %s157, %s171
    %p173 = scmp.eq.s32.totalorder %s19, 0
    %p174 = por %p172, %p173
    %s176 = sadd.s32 %s175, 1
    %p179 = scmp.eq.s32.totalorder %s13, 3
    %p180 = scmp.ne.s32.totalorder %s175, %s177
    %p181 = scmp.eq.s32.totalorder %s13, 0
    %p182 = por %p180, %p181
    %p183 = scmp.ne.s32.totalorder %s175, %s177
    %p184 = scmp.eq.s32.totalorder %s18, 3
    %p185 = por %p183, %p184
    %p186 = scmp.ne.s32.totalorder %s177, %s178
    %p187 = scmp.eq.s32.totalorder %s18, 0
    %p188 = por %p186, %p187
    %p189 = scmp.ne.s32.totalorder %s177, %s178
    %p190 = scmp.eq.s32.totalorder %s19, 3
    %p191 = por %p189, %p190
    %p193 = scmp.ne.s32.totalorder %s178, %s192
    %p194 = scmp.eq.s32.totalorder %s19, 0
    %p195 = por %p193, %p194
    %s197 = sadd.s32 %s196, 1
    %p200 = scmp.eq.s32.totalorder %s13, 3
    %p201 = scmp.ne.s32.totalorder %s196, %s198
    %p202 = scmp.eq.s32.totalorder %s13, 0
    %p203 = por %p201, %p202
    %p204 = scmp.ne.s32.totalorder %s196, %s198
    %p205 = scmp.eq.s32.totalorder %s18, 3
    %p206 = por %p204, %p205
    %p207 = scmp.ne.s32.totalorder %s198, %s199
    %p208 = scmp.eq.s32.totalorder %s18, 0
    %p209 = por %p207, %p208
    %p210 = scmp.ne.s32.totalorder %s198, %s199
    %p211 = scmp.eq.s32.totalorder %s19, 3
    %p212 = por %p210, %p211
    %p214 = scmp.ne.s32.totalorder %s199, %s213
    %p215 = scmp.eq.s32.totalorder %s19, 0
    %p216 = por %p214, %p215
    %s217 = ssub.s32 %s20, %s32
    %s218 = ssub.s32 %s21, %s28
    %s219 = sor.u32 %s217, %s218
    %p220 = scmp.eq.s32.totalorder %s219, 0
    %s222 = sadd.s32 %s221, 1
    %s223 = scalar_select %p220, %s221, %s222
    %p226 = pneg %p220
    %p227 = scmp.eq.s32.totalorder %s13, 3
    %p228 = por %p226, %p227
    %p229 = scmp.ne.s32.totalorder %s221, %s224
    %p230 = scmp.eq.s32.totalorder %s13, 0
    %p231 = por %p229, %p230
    %p232 = scmp.ne.s32.totalorder %s221, %s224
    %p233 = scmp.eq.s32.totalorder %s18, 3
    %p234 = por %p232, %p233
    %p235 = scmp.ne.s32.totalorder %s224, %s225
    %p236 = scmp.eq.s32.totalorder %s18, 0
    %p237 = por %p235, %p236
    %p238 = scmp.ne.s32.totalorder %s224, %s225
    %p239 = scmp.eq.s32.totalorder %s19, 3
    %p240 = por %p238, %p239
    %p242 = scmp.ne.s32.totalorder %s225, %s241
    %p243 = scmp.eq.s32.totalorder %s19, 0
    %p244 = por %p242, %p243
    %p245 = scmp.le.s32.totalorder 1, %s13
    %p246 = scmp.lt.s32.totalorder %s13, 5
    %p247 = pnand %p245, %p246
    %p248 = pneg %p247
    // Predicated region
    $region9: #{residual_layer_nhwc.1} parent=5 // pred_check
      _
    $region10: #{residual_layer_nhwc.1} parent=5 // pred_check_branch
      %250 = sbr.rel (%p247) target = $region12
    $region11: #{residual_layer_nhwc.1} parent=5 // pred_region
      %s251 = ssub.s32 %s13, 1
      // Predicated region
      $region13: #{residual_layer_nhwc.1} parent=11 // pred_check
        %p252 = pneg %p146
      $region14: #{residual_layer_nhwc.1} parent=11 // pred_check_branch
        %254 = sbr.rel (%p252) target = $region16
      $region15: #{residual_layer_nhwc.1} parent=11 // pred_region
        _
      $region16: #{residual_layer_nhwc.1} parent=11 // pred_fallthru
        _
      // Predicated region
      $region17: #{residual_layer_nhwc.1} parent=11 // pred_check
        %p255 = pneg %p167
      $region18: #{residual_layer_nhwc.1} parent=11 // pred_check_branch
        %257 = sbr.rel (%p255) target = $region20
      $region19: #{residual_layer_nhwc.1} parent=11 // pred_region
        _
      $region20: #{residual_layer_nhwc.1} parent=11 // pred_fallthru
        _
      // Predicated region
      $region21: #{residual_layer_nhwc.1} parent=11 // pred_check
        %p258 = pneg %p188
      $region22: #{residual_layer_nhwc.1} parent=11 // pred_check_branch
        %260 = sbr.rel (%p258) target = $region24
      $region23: #{residual_layer_nhwc.1} parent=11 // pred_region
        _
      $region24: #{residual_layer_nhwc.1} parent=11 // pred_fallthru
        _
      // Predicated region
      $region25: #{residual_layer_nhwc.1} parent=11 // pred_check
        %p261 = pneg %p209
      $region26: #{residual_layer_nhwc.1} parent=11 // pred_check_branch
        %263 = sbr.rel (%p261) target = $region28
      $region27: #{residual_layer_nhwc.1} parent=11 // pred_region
        _
      $region28: #{residual_layer_nhwc.1} parent=11 // pred_fallthru
        _
    $region12: #{residual_layer_nhwc.1} parent=5 // pred_fallthru
      _
    %p264 = scmp.lt.s32.totalorder %s13, 4
    // Predicated region
    $region29: #{residual_layer_nhwc.1} parent=5 // pred_check
      %p265 = pneg %p264
    $region30: #{residual_layer_nhwc.1} parent=5 // pred_check_branch
      %267 = sbr.rel (%p265) target = $region32
    $region31: #{residual_layer_nhwc.1} parent=5 // pred_region
      // Predicated region
      $region33: #{residual_layer_nhwc.1} parent=31 // pred_check
        %p268 = pneg %p47
      $region34: #{residual_layer_nhwc.1} parent=31 // pred_check_branch
        %270 = sbr.rel (%p268) target = $region36
      $region35: #{residual_layer_nhwc.1} parent=31 // pred_region
        %s271 = smul.u32 8, %s21
        %p272 = scmp.lt.s32.totalorder %s20, 1
        %s273 = scalar_select %p272, %s20, 1
        %p274 = scmp.lt.s32.totalorder %s271, 15
        %s275 = scalar_select %p274, %s271, 15
        %s276 = smul.addr %s275, 2
        %s277 = smul.addr %s273, 32
        %s278 = sadd.s32 %s276, %s277
        %s279 = smul.addr %s278, 8
        %s280 = scalar_lea.vmem %s0, %s279
        %s281 = smul.u32 8, %s21
      $region36: #{residual_layer_nhwc.1} parent=31 // pred_fallthru
        _
      // Predicated region
      $region37: #{residual_layer_nhwc.1} parent=31 // pred_check
        %p282 = pneg %p83
      $region38: #{residual_layer_nhwc.1} parent=31 // pred_check_branch
        %284 = sbr.rel (%p282) target = $region40
      $region39: #{residual_layer_nhwc.1} parent=31 // pred_region
        %s285 = smul.u32 %s21, 8
        %s286 = ssub.s32 %s285, 1
        %p287 = scmp.gt.s32.totalorder %s286, 0
        %s288 = scalar_select %p287, %s286, 0
        %p289 = scmp.lt.s32.totalorder %s20, 1
        %s290 = scalar_select %p289, %s20, 1
        %p291 = scmp.lt.s32.totalorder %s288, 15
        %s292 = scalar_select %p291, %s288, 15
        %s293 = smul.addr %s292, 2
        %s294 = smul.addr %s290, 32
        %s295 = sadd.s32 %s293, %s294
        %s296 = smul.addr %s295, 8
        %s297 = scalar_lea.vmem %s1, %s296
        %s298 = smul.u32 %s21, 8
        %s299 = ssub.s32 %s298, 1
        %p300 = scmp.gt.s32.totalorder %s299, 0
        %s301 = scalar_select %p300, %s299, 0
      $region40: #{residual_layer_nhwc.1} parent=31 // pred_fallthru
        _
      // Predicated region
      $region41: #{residual_layer_nhwc.1} parent=31 // pred_check
        %p302 = pneg %p119
      $region42: #{residual_layer_nhwc.1} parent=31 // pred_check_branch
        %304 = sbr.rel (%p302) target = $region44
      $region43: #{residual_layer_nhwc.1} parent=31 // pred_region
        %s305 = smul.u32 %s21, 8
        %s306 = sadd.s32 %s305, 8
        %p307 = scmp.lt.s32.totalorder %s306, 15
        %s308 = scalar_select %p307, %s306, 15
        %p309 = scmp.lt.s32.totalorder %s20, 1
        %s310 = scalar_select %p309, %s20, 1
        %p311 = scmp.lt.s32.totalorder %s308, 15
        %s312 = scalar_select %p311, %s308, 15
        %s313 = smul.addr %s312, 2
        %s314 = smul.addr %s310, 32
        %s315 = sadd.s32 %s313, %s314
        %s316 = smul.addr %s315, 8
        %s317 = scalar_lea.vmem %s2, %s316
        %s318 = smul.u32 %s21, 8
        %s319 = sadd.s32 %s318, 8
        %p320 = scmp.lt.s32.totalorder %s319, 15
        %s321 = scalar_select %p320, %s319, 15
      $region44: #{residual_layer_nhwc.1} parent=31 // pred_fallthru
        _
    $region32: #{residual_layer_nhwc.1} parent=5 // pred_fallthru
      _
    %p322 = scmp.le.s32.totalorder 1, %s13
    %p323 = scmp.lt.s32.totalorder %s13, 5
    %p324 = pnand %p322, %p323
    %p325 = pneg %p324
    // Predicated region
    $region45: #{residual_layer_nhwc.1} parent=5 // pred_check
      _
    $region46: #{residual_layer_nhwc.1} parent=5 // pred_check_branch
      %327 = sbr.rel (%p324) target = $region48
    $region47: #{residual_layer_nhwc.1} parent=5 // pred_region
      %s328 = ssub.s32 %s13, 1
      %s329 = smul.u32 8, %s23
      %p330 = scmp.lt.s32.totalorder %s22, 1
      %s331 = scalar_select %p330, %s22, 1
      %p332 = scmp.lt.s32.totalorder %s329, 15
      %s333 = scalar_select %p332, %s329, 15
      %s334 = smul.addr %s333, 2
      %s335 = smul.addr %s331, 32
      %s336 = sadd.s32 %s334, %s335
      %s337 = smul.addr %s336, 8
      %s338 = scalar_lea.vmem %s0, %s337
      %p339 = pneg %p53
      %p340 = pneg %p50
      %s341 = smul.u32 %s23, 8
      %s342 = ssub.s32 %s341, 1
      %p343 = scmp.gt.s32.totalorder %s342, 0
      %s344 = scalar_select %p343, %s342, 0
      %p345 = scmp.lt.s32.totalorder %s22, 1
      %s346 = scalar_select %p345, %s22, 1
      %p347 = scmp.lt.s32.totalorder %s344, 15
      %s348 = scalar_select %p347, %s344, 15
      %s349 = smul.addr %s348, 2
      %s350 = smul.addr %s346, 32
      %s351 = sadd.s32 %s349, %s350
      %s352 = smul.addr %s351, 8
      %s353 = scalar_lea.vmem %s1, %s352
      %p354 = pneg %p89
      %p355 = pneg %p86
      %s356 = smul.u32 %s23, 8
      %s357 = sadd.s32 %s356, 8
      %p358 = scmp.lt.s32.totalorder %s357, 15
      %s359 = scalar_select %p358, %s357, 15
      %p360 = scmp.lt.s32.totalorder %s22, 1
      %s361 = scalar_select %p360, %s22, 1
      %p362 = scmp.lt.s32.totalorder %s359, 15
      %s363 = scalar_select %p362, %s359, 15
      %s364 = smul.addr %s363, 2
      %s365 = smul.addr %s361, 32
      %s366 = sadd.s32 %s364, %s365
      %s367 = smul.addr %s366, 8
      %s368 = scalar_lea.vmem %s2, %s367
      %p369 = pneg %p125
      %p370 = pneg %p122
      %p371 = pneg %p146
      %p372 = pneg %p143
      %p373 = pneg %p167
      %p374 = pneg %p164
      %p375 = pneg %p188
      %p376 = pneg %p185
      %p377 = pneg %p209
      %p378 = pneg %p206
      %p379 = pneg %p237
      %p380 = pneg %p234
      %s381 = smul.u32 8, %s23
      %p382 = scmp.lt.s32.totalorder %s22, 1
      %s383 = scalar_select %p382, %s22, 1
      %p384 = scmp.lt.s32.totalorder %s381, 15
      %s385 = scalar_select %p384, %s381, 15
      %s386 = smul.addr %s385, 2
      %s387 = smul.addr %s383, 32
      %s388 = sadd.s32 %s386, %s387
      %s389 = smul.addr %s388, 8
      %s390 = scalar_lea.vmem %s7, %s389
      %s391 = smul.u32 8, %s23
      %p392 = scmp.lt.s32.totalorder %s22, 1
      %s393 = scalar_select %p392, %s22, 1
      %p394 = scmp.lt.s32.totalorder %s391, 15
      %s395 = scalar_select %p394, %s391, 15
      %s396 = smul.addr %s395, 2
      %s397 = smul.addr %s393, 32
      %s398 = sadd.s32 %s396, %s397
      %s399 = smul.addr %s398, 8
      %s400 = scalar_lea.vmem %s0, %s399
      %s401 = smul.u32 8, %s23
      %s402 = smul.u32 %s23, 8
      %s403 = ssub.s32 %s402, 1
      %p404 = scmp.gt.s32.totalorder %s403, 0
      %s405 = scalar_select %p404, %s403, 0
      %p406 = scmp.lt.s32.totalorder %s22, 1
      %s407 = scalar_select %p406, %s22, 1
      %p408 = scmp.lt.s32.totalorder %s405, 15
      %s409 = scalar_select %p408, %s405, 15
      %s410 = smul.addr %s409, 2
      %s411 = smul.addr %s407, 32
      %s412 = sadd.s32 %s410, %s411
      %s413 = smul.addr %s412, 8
      %s414 = scalar_lea.vmem %s1, %s413
      %s415 = smul.u32 %s23, 8
      %s416 = ssub.s32 %s415, 1
      %p417 = scmp.gt.s32.totalorder %s416, 0
      %s418 = scalar_select %p417, %s416, 0
      %s419 = smul.u32 %s23, 8
      %s420 = sadd.s32 %s419, 8
      %p421 = scmp.lt.s32.totalorder %s420, 15
      %s422 = scalar_select %p421, %s420, 15
      %p423 = scmp.lt.s32.totalorder %s22, 1
      %s424 = scalar_select %p423, %s22, 1
      %p425 = scmp.lt.s32.totalorder %s422, 15
      %s426 = scalar_select %p425, %s422, 15
      %s427 = smul.addr %s426, 2
      %s428 = smul.addr %s424, 32
      %s429 = sadd.s32 %s427, %s428
      %s430 = smul.addr %s429, 8
      %s431 = scalar_lea.vmem %s2, %s430
      %s432 = smul.u32 %s23, 8
      %s433 = sadd.s32 %s432, 8
      %p434 = scmp.lt.s32.totalorder %s433, 15
      %s435 = scalar_select %p434, %s433, 15
      %s436 = smul.u32 8, %s23
      %p437 = scmp.lt.s32.totalorder %s22, 1
      %s438 = scalar_select %p437, %s22, 1
      %p439 = scmp.lt.s32.totalorder %s436, 15
      %s440 = scalar_select %p439, %s436, 15
      %s441 = smul.addr %s440, 2
      %s442 = smul.addr %s438, 32
      %s443 = sadd.s32 %s441, %s442
      %s444 = smul.addr %s443, 8
      %s445 = scalar_lea.vmem %s7, %s444
      %s446 = smul.u32 8, %s23
      %v447 = vld [vmem:[%s400] sm:$0xff]
      %v448 = vld [vmem:[%s400 + $0x8] sm:$0xff]
      %v449 = vld [vmem:[%s400 + $0x10] sm:$0xff]
      %v450 = vld [vmem:[%s400 + $0x18] sm:$0xff]
      %v451 = vld [vmem:[%s400 + $0x20] sm:$0xff]
      %v452 = vld [vmem:[%s400 + $0x28] sm:$0xff]
      %v453 = vld [vmem:[%s400 + $0x30] sm:$0xff]
      %v454 = vld [vmem:[%s400 + $0x38] sm:$0xff]
      %v455 = vld [vmem:[%s400 + $0x40] sm:$0xff]
      %v456 = vld [vmem:[%s400 + $0x48] sm:$0xff]
      %v457 = vld [vmem:[%s400 + $0x50] sm:$0xff]
      %v458 = vld [vmem:[%s400 + $0x58] sm:$0xff]
      %v459 = vld [vmem:[%s400 + $0x60] sm:$0xff]
      %v460 = vld [vmem:[%s400 + $0x68] sm:$0xff]
      %v461 = vld [vmem:[%s400 + $0x70] sm:$0xff]
      %v462 = vld [vmem:[%s400 + $0x78] sm:$0xff]
      %v463 = vld [vmem:[%s414] sm:$0xff]
      %v464 = vld [vmem:[%s414 + $0x8] sm:$0xff]
      %v465 = vld [vmem:[%s431] sm:$0xff]
      %v466 = vld [vmem:[%s431 + $0x8] sm:$0xff]
      %v467 = vld [vmem:[%s3] sm:$0xf]
      %v468 = vld [vmem:[%s4] sm:$0x1]
      %v470 = vperm.slane %v468, 0
      %vm472 = vcmask 31744
      %v474 = vsel %vm472, %v463, 0
      %v477 = vsel %vm472, %v464, 0
      %v480 = vsel %vm472, %v447, 0
      %v483 = vsel %vm472, %v448, 0
      %v486 = vsel %vm472, %v449, 0
      %v489 = vsel %vm472, %v450, 0
      %v492 = vsel %vm472, %v451, 0
      %v495 = vsel %vm472, %v452, 0
      %v498 = vsel %vm472, %v453, 0
      %v501 = vsel %vm472, %v454, 0
      %v504 = vsel %vm472, %v455, 0
      %v507 = vsel %vm472, %v456, 0
      %v510 = vsel %vm472, %v457, 0
      %v513 = vsel %vm472, %v458, 0
      %v516 = vsel %vm472, %v459, 0
      %v519 = vsel %vm472, %v460, 0
      %v522 = vsel %vm472, %v461, 0
      %v525 = vsel %vm472, %v462, 0
      %v528 = vsel %vm472, %v465, 0
      %v531 = vsel %vm472, %v466, 0
      %vm533 = vcmask 1043456
      %v535 = vsel %vm533, %v467, 0
      %537 = vmatpush.msra.mxu0 0.0
      %538 = vmatpush.msra.mxu0 0.0
      %539 = vmatpush.msra.mxu0 0.0
      %540 = vmatpush.msra.mxu0 0.0
      %541 = vmatpush.msra.mxu0 0.0
      %542 = vmatpush.msra.mxu0 0.0
      %543 = vmatpush.msra.mxu0 0.0
      %544 = vmatpush.msra.mxu0 0.0
      %545 = vmatpush.msra.mxu0 0.0
      %546 = vmatpush.msra.mxu0 0.0
      %547 = vmatpush.msra.mxu0 0.0
      %548 = vmatpush.msra.mxu0 0.0
      %549 = vmatpush.msra.mxu0 0.0
      %550 = vmatpush.msra.mxu0 0.0
      %551 = vmatpush.msra.mxu0 0.0
      %552 = vmatpush.msra.mxu0 %v535
      %553 = vmatmul.f32.gmra.mxu0 %v474
      %v554 = vpop.f32.mrf.mxu0
      %v555 = vadd.f32 %v470, %v554
      %556 = vmatmul.f32.gmra.mxu0 %v477
      %v557 = vpop.f32.mrf.mxu0
      %v558 = vadd.f32 %v470, %v557
      %559 = vmatmul.f32.gmra.mxu0 %v480
      %v560 = vpop.f32.mrf.mxu0
      %v561 = vadd.f32 %v470, %v560
      %562 = vmatmul.f32.gmra.mxu0 %v483
      %v563 = vpop.f32.mrf.mxu0
      %v564 = vadd.f32 %v470, %v563
      %565 = vmatmul.f32.gmra.mxu0 %v486
      %v566 = vpop.f32.mrf.mxu0
      %v567 = vadd.f32 %v470, %v566
      %568 = vmatmul.f32.gmra.mxu0 %v489
      %v569 = vpop.f32.mrf.mxu0
      %v570 = vadd.f32 %v470, %v569
      %571 = vmatmul.f32.gmra.mxu0 %v492
      %v572 = vpop.f32.mrf.mxu0
      %v573 = vadd.f32 %v470, %v572
      %574 = vmatmul.f32.gmra.mxu0 %v495
      %v575 = vpop.f32.mrf.mxu0
      %v576 = vadd.f32 %v470, %v575
      %577 = vmatmul.f32.gmra.mxu0 %v498
      %v578 = vpop.f32.mrf.mxu0
      %v579 = vadd.f32 %v470, %v578
      %580 = vmatmul.f32.gmra.mxu0 %v501
      %v581 = vpop.f32.mrf.mxu0
      %v582 = vadd.f32 %v470, %v581
      %583 = vmatmul.f32.gmra.mxu0 %v504
      %v584 = vpop.f32.mrf.mxu0
      %v585 = vadd.f32 %v470, %v584
      %586 = vmatmul.f32.gmra.mxu0 %v507
      %v587 = vpop.f32.mrf.mxu0
      %v588 = vadd.f32 %v470, %v587
      %589 = vmatmul.f32.gmra.mxu0 %v510
      %v590 = vpop.f32.mrf.mxu0
      %v591 = vadd.f32 %v470, %v590
      %592 = vmatmul.f32.gmra.mxu0 %v513
      %v593 = vpop.f32.mrf.mxu0
      %v594 = vadd.f32 %v470, %v593
      %595 = vmatmul.f32.gmra.mxu0 %v516
      %v596 = vpop.f32.mrf.mxu0
      %v597 = vadd.f32 %v470, %v596
      %598 = vmatmul.f32.gmra.mxu0 %v519
      %v599 = vpop.f32.mrf.mxu0
      %v600 = vadd.f32 %v470, %v599
      %601 = vmatmul.f32.gmra.mxu0 %v522
      %v602 = vpop.f32.mrf.mxu0
      %v603 = vadd.f32 %v470, %v602
      %604 = vmatmul.f32.gmra.mxu0 %v525
      %v605 = vpop.f32.mrf.mxu0
      %v606 = vadd.f32 %v470, %v605
      %607 = vmatmul.f32.gmra.mxu0 %v528
      %v608 = vpop.f32.mrf.mxu0
      %v609 = vadd.f32 %v470, %v608
      %610 = vmatmul.f32.gmra.mxu0 %v531
      %v611 = vpop.f32.mrf.mxu0
      %v612 = vadd.f32 %v470, %v611
      %613 = vdwg.mxu0
      %vm614 = vcmp.gt.f32.partialorder %v555, 0.0
      %vm615 = vcmp.gt.f32.partialorder %v558, 0.0
      %vm616 = vcmp.gt.f32.partialorder %v561, 0.0
      %vm617 = vcmp.gt.f32.partialorder %v564, 0.0
      %vm618 = vcmp.gt.f32.partialorder %v567, 0.0
      %vm619 = vcmp.gt.f32.partialorder %v570, 0.0
      %vm620 = vcmp.gt.f32.partialorder %v573, 0.0
      %vm621 = vcmp.gt.f32.partialorder %v576, 0.0
      %vm622 = vcmp.gt.f32.partialorder %v579, 0.0
      %vm623 = vcmp.gt.f32.partialorder %v582, 0.0
      %vm624 = vcmp.gt.f32.partialorder %v585, 0.0
      %vm625 = vcmp.gt.f32.partialorder %v588, 0.0
      %vm626 = vcmp.gt.f32.partialorder %v591, 0.0
      %vm627 = vcmp.gt.f32.partialorder %v594, 0.0
      %vm628 = vcmp.gt.f32.partialorder %v597, 0.0
      %vm629 = vcmp.gt.f32.partialorder %v600, 0.0
      %vm630 = vcmp.gt.f32.partialorder %v603, 0.0
      %vm631 = vcmp.gt.f32.partialorder %v606, 0.0
      %vm632 = vcmp.gt.f32.partialorder %v609, 0.0
      %vm633 = vcmp.gt.f32.partialorder %v612, 0.0
      %v634 = vmul.f32 %v555, 0.01
      %v635 = vmul.f32 %v558, 0.01
      %v636 = vmul.f32 %v561, 0.01
      %v637 = vmul.f32 %v564, 0.01
      %v638 = vmul.f32 %v567, 0.01
      %v639 = vmul.f32 %v570, 0.01
      %v640 = vmul.f32 %v573, 0.01
      %v641 = vmul.f32 %v576, 0.01
      %v642 = vmul.f32 %v579, 0.01
      %v643 = vmul.f32 %v582, 0.01
      %v644 = vmul.f32 %v585, 0.01
      %v645 = vmul.f32 %v588, 0.01
      %v646 = vmul.f32 %v591, 0.01
      %v647 = vmul.f32 %v594, 0.01
      %v648 = vmul.f32 %v597, 0.01
      %v649 = vmul.f32 %v600, 0.01
      %v650 = vmul.f32 %v603, 0.01
      %v651 = vmul.f32 %v606, 0.01
      %v652 = vmul.f32 %v609, 0.01
      %v653 = vmul.f32 %v612, 0.01
      %v654 = vsel %vm614, %v555, %v634
      %v655 = vsel %vm615, %v558, %v635
      %v656 = vsel %vm616, %v561, %v636
      %v657 = vsel %vm617, %v564, %v637
      %v658 = vsel %vm618, %v567, %v638
      %v659 = vsel %vm619, %v570, %v639
      %v660 = vsel %vm620, %v573, %v640
      %v661 = vsel %vm621, %v576, %v641
      %v662 = vsel %vm622, %v579, %v642
      %v663 = vsel %vm623, %v582, %v643
      %v664 = vsel %vm624, %v585, %v644
      %v665 = vsel %vm625, %v588, %v645
      %v666 = vsel %vm626, %v591, %v646
      %v667 = vsel %vm627, %v594, %v647
      %v668 = vsel %vm628, %v597, %v648
      %v669 = vsel %vm629, %v600, %v649
      %v670 = vsel %vm630, %v603, %v650
      %v671 = vsel %vm631, %v606, %v651
      %v672 = vsel %vm632, %v609, %v652
      %v673 = vsel %vm633, %v612, %v653
      %v674 = vlaneseq
      %v675 = vshrl.u32 %v674, 7
      %v676 = vadd.s32 %v675, 8
      %v677 = vadd.s32 %v675, 16
      %v678 = vadd.s32 %v675, 24
      %v679 = vadd.s32 %v675, 32
      %v680 = vadd.s32 %v675, 40
      %v681 = vadd.s32 %v675, 48
      %v682 = vadd.s32 %v675, 56
      %v683 = vadd.s32 %v675, 64
      %v684 = vadd.s32 %v675, 72
      %v685 = vadd.s32 %v675, 80
      %v686 = vadd.s32 %v675, 88
      %v687 = vadd.s32 %v675, 96
      %v688 = vadd.s32 %v675, 104
      %v689 = vadd.s32 %v675, 112
      %v690 = vadd.s32 %v675, 120
      %v691 = vadd.s32 %v675, 128
      %v692 = vadd.s32 %v675, 136
      %v693 = vadd.s32 %v675, 144
      %v694 = vadd.s32 %v675, 152
      %vm695 = vcmp.lt.s32.totalorder %v675, 16
      %vm696 = vcmp.lt.s32.totalorder %v676, 16
      %vm697 = vcmp.lt.s32.totalorder %v677, 16
      %vm698 = vcmp.lt.s32.totalorder %v678, 16
      %vm699 = vcmp.lt.s32.totalorder %v679, 16
      %vm700 = vcmp.lt.s32.totalorder %v680, 16
      %vm701 = vcmp.lt.s32.totalorder %v681, 16
      %vm702 = vcmp.lt.s32.totalorder %v682, 16
      %vm703 = vcmp.lt.s32.totalorder %v683, 16
      %vm704 = vcmp.lt.s32.totalorder %v684, 16
      %vm705 = vcmp.lt.s32.totalorder %v685, 16
      %vm706 = vcmp.lt.s32.totalorder %v686, 16
      %vm707 = vcmp.lt.s32.totalorder %v687, 16
      %vm708 = vcmp.lt.s32.totalorder %v688, 16
      %vm709 = vcmp.lt.s32.totalorder %v689, 16
      %vm710 = vcmp.lt.s32.totalorder %v690, 16
      %vm711 = vcmp.lt.s32.totalorder %v691, 16
      %vm712 = vcmp.lt.s32.totalorder %v692, 16
      %vm713 = vcmp.lt.s32.totalorder %v693, 16
      %vm714 = vcmp.lt.s32.totalorder %v694, 16
      %p715 = scmp.eq.s32.totalorder %s23, 0
      %s716 = scalar_select %p715, 1, 0
      %v717 = vstv %s716
      %vm718 = vcmp.eq.s32.totalorder %v717, 1
      %vm719 = vmand %vm695, %vm718
      %vm720 = vmand %vm696, %vm718
      %vm721 = vmand %vm697, %vm718
      %vm722 = vmand %vm698, %vm718
      %vm723 = vmand %vm699, %vm718
      %vm724 = vmand %vm700, %vm718
      %vm725 = vmand %vm701, %vm718
      %vm726 = vmand %vm702, %vm718
      %vm727 = vmand %vm703, %vm718
      %vm728 = vmand %vm704, %vm718
      %vm729 = vmand %vm705, %vm718
      %vm730 = vmand %vm706, %vm718
      %vm731 = vmand %vm707, %vm718
      %vm732 = vmand %vm708, %vm718
      %vm733 = vmand %vm709, %vm718
      %vm734 = vmand %vm710, %vm718
      %vm735 = vmand %vm711, %vm718
      %vm736 = vmand %vm712, %vm718
      %vm737 = vmand %vm713, %vm718
      %vm738 = vmand %vm714, %vm718
      %vm739 = vcmp.ge.s32.totalorder %v675, 144
      %vm740 = vcmp.ge.s32.totalorder %v676, 144
      %vm741 = vcmp.ge.s32.totalorder %v677, 144
      %vm742 = vcmp.ge.s32.totalorder %v678, 144
      %vm743 = vcmp.ge.s32.totalorder %v679, 144
      %vm744 = vcmp.ge.s32.totalorder %v680, 144
      %vm745 = vcmp.ge.s32.totalorder %v681, 144
      %vm746 = vcmp.ge.s32.totalorder %v682, 144
      %vm747 = vcmp.ge.s32.totalorder %v683, 144
      %vm748 = vcmp.ge.s32.totalorder %v684, 144
      %vm749 = vcmp.ge.s32.totalorder %v685, 144
      %vm750 = vcmp.ge.s32.totalorder %v686, 144
      %vm751 = vcmp.ge.s32.totalorder %v687, 144
      %vm752 = vcmp.ge.s32.totalorder %v688, 144
      %vm753 = vcmp.ge.s32.totalorder %v689, 144
      %vm754 = vcmp.ge.s32.totalorder %v690, 144
      %vm755 = vcmp.ge.s32.totalorder %v691, 144
      %vm756 = vcmp.ge.s32.totalorder %v692, 144
      %vm757 = vcmp.ge.s32.totalorder %v693, 144
      %vm758 = vcmp.ge.s32.totalorder %v694, 144
      %p759 = scmp.eq.s32.totalorder %s23, 1
      %s760 = scalar_select %p759, 1, 0
      %v761 = vstv %s760
      %vm762 = vcmp.eq.s32.totalorder %v761, 1
      %vm763 = vmand %vm739, %vm762
      %vm764 = vmand %vm740, %vm762
      %vm765 = vmand %vm741, %vm762
      %vm766 = vmand %vm742, %vm762
      %vm767 = vmand %vm743, %vm762
      %vm768 = vmand %vm744, %vm762
      %vm769 = vmand %vm745, %vm762
      %vm770 = vmand %vm746, %vm762
      %vm771 = vmand %vm747, %vm762
      %vm772 = vmand %vm748, %vm762
      %vm773 = vmand %vm749, %vm762
      %vm774 = vmand %vm750, %vm762
      %vm775 = vmand %vm751, %vm762
      %vm776 = vmand %vm752, %vm762
      %vm777 = vmand %vm753, %vm762
      %vm778 = vmand %vm754, %vm762
      %vm779 = vmand %vm755, %vm762
      %vm780 = vmand %vm756, %vm762
      %vm781 = vmand %vm757, %vm762
      %vm782 = vmand %vm758, %vm762
      %vm783 = vmor %vm719, %vm763
      %vm784 = vmor %vm720, %vm764
      %vm785 = vmor %vm721, %vm765
      %vm786 = vmor %vm722, %vm766
      %vm787 = vmor %vm723, %vm767
      %vm788 = vmor %vm724, %vm768
      %vm789 = vmor %vm725, %vm769
      %vm790 = vmor %vm726, %vm770
      %vm791 = vmor %vm727, %vm771
      %vm792 = vmor %vm728, %vm772
      %vm793 = vmor %vm729, %vm773
      %vm794 = vmor %vm730, %vm774
      %vm795 = vmor %vm731, %vm775
      %vm796 = vmor %vm732, %vm776
      %vm797 = vmor %vm733, %vm777
      %vm798 = vmor %vm734, %vm778
      %vm799 = vmor %vm735, %vm779
      %vm800 = vmor %vm736, %vm780
      %vm801 = vmor %vm737, %vm781
      %vm802 = vmor %vm738, %vm782
      %v803 = vsel %vm783, 1, 0
      %v804 = vsel %vm784, 1, 0
      %v805 = vsel %vm785, 1, 0
      %v806 = vsel %vm786, 1, 0
      %v807 = vsel %vm787, 1, 0
      %v808 = vsel %vm788, 1, 0
      %v809 = vsel %vm789, 1, 0
      %v810 = vsel %vm790, 1, 0
      %v811 = vsel %vm791, 1, 0
      %v812 = vsel %vm792, 1, 0
      %v813 = vsel %vm793, 1, 0
      %v814 = vsel %vm794, 1, 0
      %v815 = vsel %vm795, 1, 0
      %v816 = vsel %vm796, 1, 0
      %v817 = vsel %vm797, 1, 0
      %v818 = vsel %vm798, 1, 0
      %v819 = vsel %vm799, 1, 0
      %v820 = vsel %vm800, 1, 0
      %v821 = vsel %vm801, 1, 0
      %v822 = vsel %vm802, 1, 0
      %vm823 = vcmp.eq.s32.totalorder %v803, 1
      %vm824 = vcmp.eq.s32.totalorder %v804, 1
      %vm825 = vcmp.eq.s32.totalorder %v805, 1
      %vm826 = vcmp.eq.s32.totalorder %v806, 1
      %vm827 = vcmp.eq.s32.totalorder %v807, 1
      %vm828 = vcmp.eq.s32.totalorder %v808, 1
      %vm829 = vcmp.eq.s32.totalorder %v809, 1
      %vm830 = vcmp.eq.s32.totalorder %v810, 1
      %vm831 = vcmp.eq.s32.totalorder %v811, 1
      %vm832 = vcmp.eq.s32.totalorder %v812, 1
      %vm833 = vcmp.eq.s32.totalorder %v813, 1
      %vm834 = vcmp.eq.s32.totalorder %v814, 1
      %vm835 = vcmp.eq.s32.totalorder %v815, 1
      %vm836 = vcmp.eq.s32.totalorder %v816, 1
      %vm837 = vcmp.eq.s32.totalorder %v817, 1
      %vm838 = vcmp.eq.s32.totalorder %v818, 1
      %vm839 = vcmp.eq.s32.totalorder %v819, 1
      %vm840 = vcmp.eq.s32.totalorder %v820, 1
      %vm841 = vcmp.eq.s32.totalorder %v821, 1
      %vm842 = vcmp.eq.s32.totalorder %v822, 1
      %v843 = vsel %vm823, 0.0, %v654
      %v844 = vsel %vm824, 0.0, %v655
      %v845 = vsel %vm825, 0.0, %v656
      %v846 = vsel %vm826, 0.0, %v657
      %v847 = vsel %vm827, 0.0, %v658
      %v848 = vsel %vm828, 0.0, %v659
      %v849 = vsel %vm829, 0.0, %v660
      %v850 = vsel %vm830, 0.0, %v661
      %v851 = vsel %vm831, 0.0, %v662
      %v852 = vsel %vm832, 0.0, %v663
      %v853 = vsel %vm833, 0.0, %v664
      %v854 = vsel %vm834, 0.0, %v665
      %v855 = vsel %vm835, 0.0, %v666
      %v856 = vsel %vm836, 0.0, %v667
      %v857 = vsel %vm837, 0.0, %v668
      %v858 = vsel %vm838, 0.0, %v669
      %v859 = vsel %vm839, 0.0, %v670
      %v860 = vsel %vm840, 0.0, %v671
      %v861 = vsel %vm841, 0.0, %v672
      %v862 = vsel %vm842, 0.0, %v673
      %vm883 = vcmask 1040384
      %v884 = vrot.slane %v843, 7
      %v885 = vrot.slane %v844, 7
      %v886 = vsel %vm883, %v884, %v885
      %v887 = vrot.slane %v845, 7
      %v888 = vsel %vm883, %v885, %v887
      %v889 = vrot.slane %v846, 7
      %v890 = vsel %vm883, %v887, %v889
      %v891 = vrot.slane %v847, 7
      %v892 = vsel %vm883, %v889, %v891
      %v893 = vrot.slane %v848, 7
      %v894 = vsel %vm883, %v891, %v893
      %v895 = vrot.slane %v849, 7
      %v896 = vsel %vm883, %v893, %v895
      %v897 = vrot.slane %v850, 7
      %v898 = vsel %vm883, %v895, %v897
      %v899 = vrot.slane %v851, 7
      %v900 = vsel %vm883, %v897, %v899
      %v901 = vrot.slane %v852, 7
      %v902 = vsel %vm883, %v899, %v901
      %v903 = vrot.slane %v853, 7
      %v904 = vsel %vm883, %v901, %v903
      %v905 = vrot.slane %v854, 7
      %v906 = vsel %vm883, %v903, %v905
      %v907 = vrot.slane %v855, 7
      %v908 = vsel %vm883, %v905, %v907
      %v909 = vrot.slane %v856, 7
      %v910 = vsel %vm883, %v907, %v909
      %v911 = vrot.slane %v857, 7
      %v912 = vsel %vm883, %v909, %v911
      %v913 = vrot.slane %v858, 7
      %v914 = vsel %vm883, %v911, %v913
      %v915 = vrot.slane %v859, 7
      %v916 = vsel %vm883, %v913, %v915
      %v917 = vrot.slane %v860, 7
      %v918 = vsel %vm883, %v915, %v917
      %v919 = vrot.slane %v861, 7
      %v920 = vsel %vm883, %v917, %v919
      %v921 = vrot.slane %v862, 7
      %v922 = vsel %vm883, %v919, %v921
      %v944 = vsel %vm883, 0.0, %v884
      %v945 = vsel %vm883, %v921, 0.0
      %vm946 = vcmp.lt.s32.totalorder %v675, 0
      %v947 = vsub.s32 0, %v675
      %v948 = vsel %vm946, %v947, %v675
      %v949 = vshrl.u32 %v948, 4
      %v950 = vand.u32 %v948, 15
      %v951 = vsub.s32 0, %v950
      %v952 = vsel %vm946, %v951, %v950
      %vm953 = vcmp.lt.s32.totalorder %v676, 0
      %v954 = vsub.s32 0, %v676
      %v955 = vsel %vm953, %v954, %v676
      %v956 = vshrl.u32 %v955, 4
      %v957 = vand.u32 %v955, 15
      %v958 = vsub.s32 0, %v957
      %v959 = vsel %vm953, %v958, %v957
      %vm960 = vcmp.lt.s32.totalorder %v677, 0
      %v961 = vsub.s32 0, %v677
      %v962 = vsel %vm960, %v961, %v677
      %v963 = vshrl.u32 %v962, 4
      %v964 = vand.u32 %v962, 15
      %v965 = vsub.s32 0, %v964
      %v966 = vsel %vm960, %v965, %v964
      %vm967 = vcmp.lt.s32.totalorder %v678, 0
      %v968 = vsub.s32 0, %v678
      %v969 = vsel %vm967, %v968, %v678
      %v970 = vshrl.u32 %v969, 4
      %v971 = vand.u32 %v969, 15
      %v972 = vsub.s32 0, %v971
      %v973 = vsel %vm967, %v972, %v971
      %vm974 = vcmp.lt.s32.totalorder %v679, 0
      %v975 = vsub.s32 0, %v679
      %v976 = vsel %vm974, %v975, %v679
      %v977 = vshrl.u32 %v976, 4
      %v978 = vand.u32 %v976, 15
      %v979 = vsub.s32 0, %v978
      %v980 = vsel %vm974, %v979, %v978
      %vm981 = vcmp.lt.s32.totalorder %v680, 0
      %v982 = vsub.s32 0, %v680
      %v983 = vsel %vm981, %v982, %v680
      %v984 = vshrl.u32 %v983, 4
      %v985 = vand.u32 %v983, 15
      %v986 = vsub.s32 0, %v985
      %v987 = vsel %vm981, %v986, %v985
      %vm988 = vcmp.lt.s32.totalorder %v681, 0
      %v989 = vsub.s32 0, %v681
      %v990 = vsel %vm988, %v989, %v681
      %v991 = vshrl.u32 %v990, 4
      %v992 = vand.u32 %v990, 15
      %v993 = vsub.s32 0, %v992
      %v994 = vsel %vm988, %v993, %v992
      %vm995 = vcmp.lt.s32.totalorder %v682, 0
      %v996 = vsub.s32 0, %v682
      %v997 = vsel %vm995, %v996, %v682
      %v998 = vshrl.u32 %v997, 4
      %v999 = vand.u32 %v997, 15
      %v1000 = vsub.s32 0, %v999
      %v1001 = vsel %vm995, %v1000, %v999
      %vm1002 = vcmp.lt.s32.totalorder %v683, 0
      %v1003 = vsub.s32 0, %v683
      %v1004 = vsel %vm1002, %v1003, %v683
      %v1005 = vshrl.u32 %v1004, 4
      %v1006 = vand.u32 %v1004, 15
      %v1007 = vsub.s32 0, %v1006
      %v1008 = vsel %vm1002, %v1007, %v1006
      %vm1009 = vcmp.lt.s32.totalorder %v684, 0
      %v1010 = vsub.s32 0, %v684
      %v1011 = vsel %vm1009, %v1010, %v684
      %v1012 = vshrl.u32 %v1011, 4
      %v1013 = vand.u32 %v1011, 15
      %v1014 = vsub.s32 0, %v1013
      %v1015 = vsel %vm1009, %v1014, %v1013
      %vm1016 = vcmp.lt.s32.totalorder %v685, 0
      %v1017 = vsub.s32 0, %v685
      %v1018 = vsel %vm1016, %v1017, %v685
      %v1019 = vshrl.u32 %v1018, 4
      %v1020 = vand.u32 %v1018, 15
      %v1021 = vsub.s32 0, %v1020
      %v1022 = vsel %vm1016, %v1021, %v1020
      %vm1023 = vcmp.lt.s32.totalorder %v686, 0
      %v1024 = vsub.s32 0, %v686
      %v1025 = vsel %vm1023, %v1024, %v686
      %v1026 = vshrl.u32 %v1025, 4
      %v1027 = vand.u32 %v1025, 15
      %v1028 = vsub.s32 0, %v1027
      %v1029 = vsel %vm1023, %v1028, %v1027
      %vm1030 = vcmp.lt.s32.totalorder %v687, 0
      %v1031 = vsub.s32 0, %v687
      %v1032 = vsel %vm1030, %v1031, %v687
      %v1033 = vshrl.u32 %v1032, 4
      %v1034 = vand.u32 %v1032, 15
      %v1035 = vsub.s32 0, %v1034
      %v1036 = vsel %vm1030, %v1035, %v1034
      %vm1037 = vcmp.lt.s32.totalorder %v688, 0
      %v1038 = vsub.s32 0, %v688
      %v1039 = vsel %vm1037, %v1038, %v688
      %v1040 = vshrl.u32 %v1039, 4
      %v1041 = vand.u32 %v1039, 15
      %v1042 = vsub.s32 0, %v1041
      %v1043 = vsel %vm1037, %v1042, %v1041
      %vm1044 = vcmp.lt.s32.totalorder %v689, 0
      %v1045 = vsub.s32 0, %v689
      %v1046 = vsel %vm1044, %v1045, %v689
      %v1047 = vshrl.u32 %v1046, 4
      %v1048 = vand.u32 %v1046, 15
      %v1049 = vsub.s32 0, %v1048
      %v1050 = vsel %vm1044, %v1049, %v1048
      %vm1051 = vcmp.lt.s32.totalorder %v690, 0
      %v1052 = vsub.s32 0, %v690
      %v1053 = vsel %vm1051, %v1052, %v690
      %v1054 = vshrl.u32 %v1053, 4
      %v1055 = vand.u32 %v1053, 15
      %v1056 = vsub.s32 0, %v1055
      %v1057 = vsel %vm1051, %v1056, %v1055
      %vm1058 = vcmp.ne.s32.totalorder %v952, 0
      %vm1059 = vcmp.ne.s32.totalorder %v959, 0
      %vm1060 = vcmp.ne.s32.totalorder %v966, 0
      %vm1061 = vcmp.ne.s32.totalorder %v973, 0
      %vm1062 = vcmp.ne.s32.totalorder %v980, 0
      %vm1063 = vcmp.ne.s32.totalorder %v987, 0
      %vm1064 = vcmp.ne.s32.totalorder %v994, 0
      %vm1065 = vcmp.ne.s32.totalorder %v1001, 0
      %vm1066 = vcmp.ne.s32.totalorder %v1008, 0
      %vm1067 = vcmp.ne.s32.totalorder %v1015, 0
      %vm1068 = vcmp.ne.s32.totalorder %v1022, 0
      %vm1069 = vcmp.ne.s32.totalorder %v1029, 0
      %vm1070 = vcmp.ne.s32.totalorder %v1036, 0
      %vm1071 = vcmp.ne.s32.totalorder %v1043, 0
      %vm1072 = vcmp.ne.s32.totalorder %v1050, 0
      %vm1073 = vcmp.ne.s32.totalorder %v1057, 0
      %vm1074 = vcmp.lt.s32.totalorder %v952, 0
      %vm1075 = vcmp.lt.s32.totalorder %v959, 0
      %vm1076 = vcmp.lt.s32.totalorder %v966, 0
      %vm1077 = vcmp.lt.s32.totalorder %v973, 0
      %vm1078 = vcmp.lt.s32.totalorder %v980, 0
      %vm1079 = vcmp.lt.s32.totalorder %v987, 0
      %vm1080 = vcmp.lt.s32.totalorder %v994, 0
      %vm1081 = vcmp.lt.s32.totalorder %v1001, 0
      %vm1082 = vcmp.lt.s32.totalorder %v1008, 0
      %vm1083 = vcmp.lt.s32.totalorder %v1015, 0
      %vm1084 = vcmp.lt.s32.totalorder %v1022, 0
      %vm1085 = vcmp.lt.s32.totalorder %v1029, 0
      %vm1086 = vcmp.lt.s32.totalorder %v1036, 0
      %vm1087 = vcmp.lt.s32.totalorder %v1043, 0
      %vm1088 = vcmp.lt.s32.totalorder %v1050, 0
      %vm1089 = vcmp.lt.s32.totalorder %v1057, 0
      %vm1090 = vmand %vm1074, %vm1058
      %vm1091 = vmand %vm1075, %vm1059
      %vm1092 = vmand %vm1076, %vm1060
      %vm1093 = vmand %vm1077, %vm1061
      %vm1094 = vmand %vm1078, %vm1062
      %vm1095 = vmand %vm1079, %vm1063
      %vm1096 = vmand %vm1080, %vm1064
      %vm1097 = vmand %vm1081, %vm1065
      %vm1098 = vmand %vm1082, %vm1066
      %vm1099 = vmand %vm1083, %vm1067
      %vm1100 = vmand %vm1084, %vm1068
      %vm1101 = vmand %vm1085, %vm1069
      %vm1102 = vmand %vm1086, %vm1070
      %vm1103 = vmand %vm1087, %vm1071
      %vm1104 = vmand %vm1088, %vm1072
      %vm1105 = vmand %vm1089, %vm1073
      %v1106 = vadd.s32 %v952, 16
      %v1107 = vadd.s32 %v959, 16
      %v1108 = vadd.s32 %v966, 16
      %v1109 = vadd.s32 %v973, 16
      %v1110 = vadd.s32 %v980, 16
      %v1111 = vadd.s32 %v987, 16
      %v1112 = vadd.s32 %v994, 16
      %v1113 = vadd.s32 %v1001, 16
      %v1114 = vadd.s32 %v1008, 16
      %v1115 = vadd.s32 %v1015, 16
      %v1116 = vadd.s32 %v1022, 16
      %v1117 = vadd.s32 %v1029, 16
      %v1118 = vadd.s32 %v1036, 16
      %v1119 = vadd.s32 %v1043, 16
      %v1120 = vadd.s32 %v1050, 16
      %v1121 = vadd.s32 %v1057, 16
      %v1122 = vsel %vm1090, %v1106, %v952
      %v1123 = vsel %vm1091, %v1107, %v959
      %v1124 = vsel %vm1092, %v1108, %v966
      %v1125 = vsel %vm1093, %v1109, %v973
      %v1126 = vsel %vm1094, %v1110, %v980
      %v1127 = vsel %vm1095, %v1111, %v987
      %v1128 = vsel %vm1096, %v1112, %v994
      %v1129 = vsel %vm1097, %v1113, %v1001
      %v1130 = vsel %vm1098, %v1114, %v1008
      %v1131 = vsel %vm1099, %v1115, %v1015
      %v1132 = vsel %vm1100, %v1116, %v1022
      %v1133 = vsel %vm1101, %v1117, %v1029
      %v1134 = vsel %vm1102, %v1118, %v1036
      %v1135 = vsel %vm1103, %v1119, %v1043
      %v1136 = vsel %vm1104, %v1120, %v1050
      %v1137 = vsel %vm1105, %v1121, %v1057
      %vm1138 = vcmp.gt.s32.totalorder %v1122, 0
      %vm1139 = vcmp.gt.s32.totalorder %v1123, 0
      %vm1140 = vcmp.gt.s32.totalorder %v1124, 0
      %vm1141 = vcmp.gt.s32.totalorder %v1125, 0
      %vm1142 = vcmp.gt.s32.totalorder %v1126, 0
      %vm1143 = vcmp.gt.s32.totalorder %v1127, 0
      %vm1144 = vcmp.gt.s32.totalorder %v1128, 0
      %vm1145 = vcmp.gt.s32.totalorder %v1129, 0
      %vm1146 = vcmp.gt.s32.totalorder %v1130, 0
      %vm1147 = vcmp.gt.s32.totalorder %v1131, 0
      %vm1148 = vcmp.gt.s32.totalorder %v1132, 0
      %vm1149 = vcmp.gt.s32.totalorder %v1133, 0
      %vm1150 = vcmp.gt.s32.totalorder %v1134, 0
      %vm1151 = vcmp.gt.s32.totalorder %v1135, 0
      %vm1152 = vcmp.gt.s32.totalorder %v1136, 0
      %vm1153 = vcmp.gt.s32.totalorder %v1137, 0
      %vm1154 = vcmp.lt.s32.totalorder %v1122, 15
      %vm1155 = vcmp.lt.s32.totalorder %v1123, 15
      %vm1156 = vcmp.lt.s32.totalorder %v1124, 15
      %vm1157 = vcmp.lt.s32.totalorder %v1125, 15
      %vm1158 = vcmp.lt.s32.totalorder %v1126, 15
      %vm1159 = vcmp.lt.s32.totalorder %v1127, 15
      %vm1160 = vcmp.lt.s32.totalorder %v1128, 15
      %vm1161 = vcmp.lt.s32.totalorder %v1129, 15
      %vm1162 = vcmp.lt.s32.totalorder %v1130, 15
      %vm1163 = vcmp.lt.s32.totalorder %v1131, 15
      %vm1164 = vcmp.lt.s32.totalorder %v1132, 15
      %vm1165 = vcmp.lt.s32.totalorder %v1133, 15
      %vm1166 = vcmp.lt.s32.totalorder %v1134, 15
      %vm1167 = vcmp.lt.s32.totalorder %v1135, 15
      %vm1168 = vcmp.lt.s32.totalorder %v1136, 15
      %vm1169 = vcmp.lt.s32.totalorder %v1137, 15
      %v1170 = vsel %vm1138, 1, 0
      %v1171 = vsel %vm1139, 1, 0
      %v1172 = vsel %vm1140, 1, 0
      %v1173 = vsel %vm1141, 1, 0
      %v1174 = vsel %vm1142, 1, 0
      %v1175 = vsel %vm1143, 1, 0
      %v1176 = vsel %vm1144, 1, 0
      %v1177 = vsel %vm1145, 1, 0
      %v1178 = vsel %vm1146, 1, 0
      %v1179 = vsel %vm1147, 1, 0
      %v1180 = vsel %vm1148, 1, 0
      %v1181 = vsel %vm1149, 1, 0
      %v1182 = vsel %vm1150, 1, 0
      %v1183 = vsel %vm1151, 1, 0
      %v1184 = vsel %vm1152, 1, 0
      %v1185 = vsel %vm1153, 1, 0
      %vm1186 = vcmp.eq.s32.totalorder %v1170, 1
      %vm1187 = vcmp.eq.s32.totalorder %v1171, 1
      %vm1188 = vcmp.eq.s32.totalorder %v1172, 1
      %vm1189 = vcmp.eq.s32.totalorder %v1173, 1
      %vm1190 = vcmp.eq.s32.totalorder %v1174, 1
      %vm1191 = vcmp.eq.s32.totalorder %v1175, 1
      %vm1192 = vcmp.eq.s32.totalorder %v1176, 1
      %vm1193 = vcmp.eq.s32.totalorder %v1177, 1
      %vm1194 = vcmp.eq.s32.totalorder %v1178, 1
      %vm1195 = vcmp.eq.s32.totalorder %v1179, 1
      %vm1196 = vcmp.eq.s32.totalorder %v1180, 1
      %vm1197 = vcmp.eq.s32.totalorder %v1181, 1
      %vm1198 = vcmp.eq.s32.totalorder %v1182, 1
      %vm1199 = vcmp.eq.s32.totalorder %v1183, 1
      %vm1200 = vcmp.eq.s32.totalorder %v1184, 1
      %vm1201 = vcmp.eq.s32.totalorder %v1185, 1
      %v1202 = vsel %vm1186, %v944, 0.0
      %v1203 = vsel %vm1187, %v886, 0.0
      %v1204 = vsel %vm1188, %v888, 0.0
      %v1205 = vsel %vm1189, %v890, 0.0
      %v1206 = vsel %vm1190, %v892, 0.0
      %v1207 = vsel %vm1191, %v894, 0.0
      %v1208 = vsel %vm1192, %v896, 0.0
      %v1209 = vsel %vm1193, %v898, 0.0
      %v1210 = vsel %vm1194, %v900, 0.0
      %v1211 = vsel %vm1195, %v902, 0.0
      %v1212 = vsel %vm1196, %v904, 0.0
      %v1213 = vsel %vm1197, %v906, 0.0
      %v1214 = vsel %vm1198, %v908, 0.0
      %v1215 = vsel %vm1199, %v910, 0.0
      %v1216 = vsel %vm1200, %v912, 0.0
      %v1217 = vsel %vm1201, %v914, 0.0
      %v1218 = vsel %vm1154, 1, 0
      %v1219 = vsel %vm1155, 1, 0
      %v1220 = vsel %vm1156, 1, 0
      %v1221 = vsel %vm1157, 1, 0
      %v1222 = vsel %vm1158, 1, 0
      %v1223 = vsel %vm1159, 1, 0
      %v1224 = vsel %vm1160, 1, 0
      %v1225 = vsel %vm1161, 1, 0
      %v1226 = vsel %vm1162, 1, 0
      %v1227 = vsel %vm1163, 1, 0
      %v1228 = vsel %vm1164, 1, 0
      %v1229 = vsel %vm1165, 1, 0
      %v1230 = vsel %vm1166, 1, 0
      %v1231 = vsel %vm1167, 1, 0
      %v1232 = vsel %vm1168, 1, 0
      %v1233 = vsel %vm1169, 1, 0
      %vm1234 = vcmp.eq.s32.totalorder %v1218, 1
      %vm1235 = vcmp.eq.s32.totalorder %v1219, 1
      %vm1236 = vcmp.eq.s32.totalorder %v1220, 1
      %vm1237 = vcmp.eq.s32.totalorder %v1221, 1
      %vm1238 = vcmp.eq.s32.totalorder %v1222, 1
      %vm1239 = vcmp.eq.s32.totalorder %v1223, 1
      %vm1240 = vcmp.eq.s32.totalorder %v1224, 1
      %vm1241 = vcmp.eq.s32.totalorder %v1225, 1
      %vm1242 = vcmp.eq.s32.totalorder %v1226, 1
      %vm1243 = vcmp.eq.s32.totalorder %v1227, 1
      %vm1244 = vcmp.eq.s32.totalorder %v1228, 1
      %vm1245 = vcmp.eq.s32.totalorder %v1229, 1
      %vm1246 = vcmp.eq.s32.totalorder %v1230, 1
      %vm1247 = vcmp.eq.s32.totalorder %v1231, 1
      %vm1248 = vcmp.eq.s32.totalorder %v1232, 1
      %vm1249 = vcmp.eq.s32.totalorder %v1233, 1
      %vm1251 = vcmask 1045504
      %v1252 = vrot.slane %v944, 2
      %v1253 = vrot.slane %v886, 2
      %v1254 = vsel %vm1251, %v1252, %v1253
      %v1255 = vrot.slane %v888, 2
      %v1256 = vsel %vm1251, %v1253, %v1255
      %v1257 = vrot.slane %v890, 2
      %v1258 = vsel %vm1251, %v1255, %v1257
      %v1259 = vrot.slane %v892, 2
      %v1260 = vsel %vm1251, %v1257, %v1259
      %v1261 = vrot.slane %v894, 2
      %v1262 = vsel %vm1251, %v1259, %v1261
      %v1263 = vrot.slane %v896, 2
      %v1264 = vsel %vm1251, %v1261, %v1263
      %v1265 = vrot.slane %v898, 2
      %v1266 = vsel %vm1251, %v1263, %v1265
      %v1267 = vrot.slane %v900, 2
      %v1268 = vsel %vm1251, %v1265, %v1267
      %v1269 = vrot.slane %v902, 2
      %v1270 = vsel %vm1251, %v1267, %v1269
      %v1271 = vrot.slane %v904, 2
      %v1272 = vsel %vm1251, %v1269, %v1271
      %v1273 = vrot.slane %v906, 2
      %v1274 = vsel %vm1251, %v1271, %v1273
      %v1275 = vrot.slane %v908, 2
      %v1276 = vsel %vm1251, %v1273, %v1275
      %v1277 = vrot.slane %v910, 2
      %v1278 = vsel %vm1251, %v1275, %v1277
      %v1279 = vrot.slane %v912, 2
      %v1280 = vsel %vm1251, %v1277, %v1279
      %v1281 = vrot.slane %v914, 2
      %v1282 = vsel %vm1251, %v1279, %v1281
      %v1283 = vrot.slane %v916, 2
      %v1284 = vsel %vm1251, %v1281, %v1283
      %v1301 = vsel %vm1234, %v1254, 0.0
      %v1302 = vsel %vm1235, %v1256, 0.0
      %v1303 = vsel %vm1236, %v1258, 0.0
      %v1304 = vsel %vm1237, %v1260, 0.0
      %v1305 = vsel %vm1238, %v1262, 0.0
      %v1306 = vsel %vm1239, %v1264, 0.0
      %v1307 = vsel %vm1240, %v1266, 0.0
      %v1308 = vsel %vm1241, %v1268, 0.0
      %v1309 = vsel %vm1242, %v1270, 0.0
      %v1310 = vsel %vm1243, %v1272, 0.0
      %v1311 = vsel %vm1244, %v1274, 0.0
      %v1312 = vsel %vm1245, %v1276, 0.0
      %v1313 = vsel %vm1246, %v1278, 0.0
      %v1314 = vsel %vm1247, %v1280, 0.0
      %v1315 = vsel %vm1248, %v1282, 0.0
      %v1316 = vsel %vm1249, %v1284, 0.0
      %v1317 = vsel %vm1186, %v888, 0.0
      %v1318 = vsel %vm1187, %v890, 0.0
      %v1319 = vsel %vm1188, %v892, 0.0
      %v1320 = vsel %vm1189, %v894, 0.0
      %v1321 = vsel %vm1190, %v896, 0.0
      %v1322 = vsel %vm1191, %v898, 0.0
      %v1323 = vsel %vm1192, %v900, 0.0
      %v1324 = vsel %vm1193, %v902, 0.0
      %v1325 = vsel %vm1194, %v904, 0.0
      %v1326 = vsel %vm1195, %v906, 0.0
      %v1327 = vsel %vm1196, %v908, 0.0
      %v1328 = vsel %vm1197, %v910, 0.0
      %v1329 = vsel %vm1198, %v912, 0.0
      %v1330 = vsel %vm1199, %v914, 0.0
      %v1331 = vsel %vm1200, %v916, 0.0
      %v1332 = vsel %vm1201, %v918, 0.0
      %v1333 = vrot.slane %v918, 2
      %v1334 = vsel %vm1251, %v1283, %v1333
      %v1335 = vrot.slane %v920, 2
      %v1336 = vsel %vm1251, %v1333, %v1335
      %v1339 = vsel %vm1234, %v1258, 0.0
      %v1340 = vsel %vm1235, %v1260, 0.0
      %v1341 = vsel %vm1236, %v1262, 0.0
      %v1342 = vsel %vm1237, %v1264, 0.0
      %v1343 = vsel %vm1238, %v1266, 0.0
      %v1344 = vsel %vm1239, %v1268, 0.0
      %v1345 = vsel %vm1240, %v1270, 0.0
      %v1346 = vsel %vm1241, %v1272, 0.0
      %v1347 = vsel %vm1242, %v1274, 0.0
      %v1348 = vsel %vm1243, %v1276, 0.0
      %v1349 = vsel %vm1244, %v1278, 0.0
      %v1350 = vsel %vm1245, %v1280, 0.0
      %v1351 = vsel %vm1246, %v1282, 0.0
      %v1352 = vsel %vm1247, %v1284, 0.0
      %v1353 = vsel %vm1248, %v1334, 0.0
      %v1354 = vsel %vm1249, %v1336, 0.0
      %v1355 = vsel %vm1186, %v892, 0.0
      %v1356 = vsel %vm1187, %v894, 0.0
      %v1357 = vsel %vm1188, %v896, 0.0
      %v1358 = vsel %vm1189, %v898, 0.0
      %v1359 = vsel %vm1190, %v900, 0.0
      %v1360 = vsel %vm1191, %v902, 0.0
      %v1361 = vsel %vm1192, %v904, 0.0
      %v1362 = vsel %vm1193, %v906, 0.0
      %v1363 = vsel %vm1194, %v908, 0.0
      %v1364 = vsel %vm1195, %v910, 0.0
      %v1365 = vsel %vm1196, %v912, 0.0
      %v1366 = vsel %vm1197, %v914, 0.0
      %v1367 = vsel %vm1198, %v916, 0.0
      %v1368 = vsel %vm1199, %v918, 0.0
      %v1369 = vsel %vm1200, %v920, 0.0
      %v1370 = vsel %vm1201, %v922, 0.0
      %v1372 = vrot.slane %v922, 2
      %v1373 = vsel %vm1251, %v1335, %v1372
      %v1374 = vrot.slane %v945, 2
      %v1375 = vsel %vm1251, %v1372, %v1374
      %v1378 = vsel %vm1234, %v1262, 0.0
      %v1379 = vsel %vm1235, %v1264, 0.0
      %v1380 = vsel %vm1236, %v1266, 0.0
      %v1381 = vsel %vm1237, %v1268, 0.0
      %v1382 = vsel %vm1238, %v1270, 0.0
      %v1383 = vsel %vm1239, %v1272, 0.0
      %v1384 = vsel %vm1240, %v1274, 0.0
      %v1385 = vsel %vm1241, %v1276, 0.0
      %v1386 = vsel %vm1242, %v1278, 0.0
      %v1387 = vsel %vm1243, %v1280, 0.0
      %v1388 = vsel %vm1244, %v1282, 0.0
      %v1389 = vsel %vm1245, %v1284, 0.0
      %v1390 = vsel %vm1246, %v1334, 0.0
      %v1391 = vsel %vm1247, %v1336, 0.0
      %v1392 = vsel %vm1248, %v1373, 0.0
      %v1393 = vsel %vm1249, %v1375, 0.0
      %vm1394 = vcmask 1046528
      %v1395 = vrot.slane %v944, 1
      %v1396 = vrot.slane %v886, 1
      %v1397 = vsel %vm1394, %v1395, %v1396
      %v1398 = vrot.slane %v888, 1
      %v1399 = vsel %vm1394, %v1396, %v1398
      %v1400 = vrot.slane %v890, 1
      %v1401 = vsel %vm1394, %v1398, %v1400
      %v1402 = vrot.slane %v892, 1
      %v1403 = vsel %vm1394, %v1400, %v1402
      %v1404 = vrot.slane %v894, 1
      %v1405 = vsel %vm1394, %v1402, %v1404
      %v1406 = vrot.slane %v896, 1
      %v1407 = vsel %vm1394, %v1404, %v1406
      %v1408 = vrot.slane %v898, 1
      %v1409 = vsel %vm1394, %v1406, %v1408
      %v1410 = vrot.slane %v900, 1
      %v1411 = vsel %vm1394, %v1408, %v1410
      %v1412 = vrot.slane %v902, 1
      %v1413 = vsel %vm1394, %v1410, %v1412
      %v1414 = vrot.slane %v904, 1
      %v1415 = vsel %vm1394, %v1412, %v1414
      %v1416 = vrot.slane %v906, 1
      %v1417 = vsel %vm1394, %v1414, %v1416
      %v1418 = vrot.slane %v908, 1
      %v1419 = vsel %vm1394, %v1416, %v1418
      %v1420 = vrot.slane %v910, 1
      %v1421 = vsel %vm1394, %v1418, %v1420
      %v1422 = vrot.slane %v912, 1
      %v1423 = vsel %vm1394, %v1420, %v1422
      %v1424 = vrot.slane %v914, 1
      %v1425 = vsel %vm1394, %v1422, %v1424
      %v1426 = vrot.slane %v916, 1
      %v1427 = vsel %vm1394, %v1424, %v1426
      %1428 = vrot.lane.b32.xlu0 %v1397, 2
      %v1429 = vpop.permute.xlu0 %1428
      %1430 = vrot.lane.b32.xlu0 %v1399, 2
      %v1431 = vpop.permute.xlu0 %1430
      %1432 = vrot.lane.b32.xlu0 %v1401, 2
      %v1433 = vpop.permute.xlu0 %1432
      %1434 = vrot.lane.b32.xlu0 %v1403, 2
      %v1435 = vpop.permute.xlu0 %1434
      %1436 = vrot.lane.b32.xlu0 %v1405, 2
      %v1437 = vpop.permute.xlu0 %1436
      %1438 = vrot.lane.b32.xlu0 %v1407, 2
      %v1439 = vpop.permute.xlu0 %1438
      %1440 = vrot.lane.b32.xlu0 %v1409, 2
      %v1441 = vpop.permute.xlu0 %1440
      %1442 = vrot.lane.b32.xlu0 %v1411, 2
      %v1443 = vpop.permute.xlu0 %1442
      %1444 = vrot.lane.b32.xlu0 %v1413, 2
      %v1445 = vpop.permute.xlu0 %1444
      %1446 = vrot.lane.b32.xlu0 %v1415, 2
      %v1447 = vpop.permute.xlu0 %1446
      %1448 = vrot.lane.b32.xlu0 %v1417, 2
      %v1449 = vpop.permute.xlu0 %1448
      %1450 = vrot.lane.b32.xlu0 %v1419, 2
      %v1451 = vpop.permute.xlu0 %1450
      %1452 = vrot.lane.b32.xlu0 %v1421, 2
      %v1453 = vpop.permute.xlu0 %1452
      %1454 = vrot.lane.b32.xlu0 %v1423, 2
      %v1455 = vpop.permute.xlu0 %1454
      %1456 = vrot.lane.b32.xlu0 %v1425, 2
      %v1457 = vpop.permute.xlu0 %1456
      %1458 = vrot.lane.b32.xlu0 %v1427, 2
      %v1459 = vpop.permute.xlu0 %1458
      %1492 = vrot.lane.b32.xlu0 %v1301, 4
      %v1493 = vpop.permute.xlu0 %1492
      %1494 = vrot.lane.b32.xlu0 %v1302, 4
      %v1495 = vpop.permute.xlu0 %1494
      %1496 = vrot.lane.b32.xlu0 %v1303, 4
      %v1497 = vpop.permute.xlu0 %1496
      %1498 = vrot.lane.b32.xlu0 %v1304, 4
      %v1499 = vpop.permute.xlu0 %1498
      %1500 = vrot.lane.b32.xlu0 %v1305, 4
      %v1501 = vpop.permute.xlu0 %1500
      %1502 = vrot.lane.b32.xlu0 %v1306, 4
      %v1503 = vpop.permute.xlu0 %1502
      %1504 = vrot.lane.b32.xlu0 %v1307, 4
      %v1505 = vpop.permute.xlu0 %1504
      %1506 = vrot.lane.b32.xlu0 %v1308, 4
      %v1507 = vpop.permute.xlu0 %1506
      %1508 = vrot.lane.b32.xlu0 %v1309, 4
      %v1509 = vpop.permute.xlu0 %1508
      %1510 = vrot.lane.b32.xlu0 %v1310, 4
      %v1511 = vpop.permute.xlu0 %1510
      %1512 = vrot.lane.b32.xlu0 %v1311, 4
      %v1513 = vpop.permute.xlu0 %1512
      %1514 = vrot.lane.b32.xlu0 %v1312, 4
      %v1515 = vpop.permute.xlu0 %1514
      %1516 = vrot.lane.b32.xlu0 %v1313, 4
      %v1517 = vpop.permute.xlu0 %1516
      %1518 = vrot.lane.b32.xlu0 %v1314, 4
      %v1519 = vpop.permute.xlu0 %1518
      %1520 = vrot.lane.b32.xlu0 %v1315, 4
      %v1521 = vpop.permute.xlu0 %1520
      %1522 = vrot.lane.b32.xlu0 %v1316, 4
      %v1523 = vpop.permute.xlu0 %1522
      %1556 = vrot.lane.b32.xlu0 %v1317, 6
      %v1557 = vpop.permute.xlu0 %1556
      %1558 = vrot.lane.b32.xlu0 %v1318, 6
      %v1559 = vpop.permute.xlu0 %1558
      %1560 = vrot.lane.b32.xlu0 %v1319, 6
      %v1561 = vpop.permute.xlu0 %1560
      %1562 = vrot.lane.b32.xlu0 %v1320, 6
      %v1563 = vpop.permute.xlu0 %1562
      %1564 = vrot.lane.b32.xlu0 %v1321, 6
      %v1565 = vpop.permute.xlu0 %1564
      %1566 = vrot.lane.b32.xlu0 %v1322, 6
      %v1567 = vpop.permute.xlu0 %1566
      %1568 = vrot.lane.b32.xlu0 %v1323, 6
      %v1569 = vpop.permute.xlu0 %1568
      %1570 = vrot.lane.b32.xlu0 %v1324, 6
      %v1571 = vpop.permute.xlu0 %1570
      %1572 = vrot.lane.b32.xlu0 %v1325, 6
      %v1573 = vpop.permute.xlu0 %1572
      %1574 = vrot.lane.b32.xlu0 %v1326, 6
      %v1575 = vpop.permute.xlu0 %1574
      %1576 = vrot.lane.b32.xlu0 %v1327, 6
      %v1577 = vpop.permute.xlu0 %1576
      %1578 = vrot.lane.b32.xlu0 %v1328, 6
      %v1579 = vpop.permute.xlu0 %1578
      %1580 = vrot.lane.b32.xlu0 %v1329, 6
      %v1581 = vpop.permute.xlu0 %1580
      %1582 = vrot.lane.b32.xlu0 %v1330, 6
      %v1583 = vpop.permute.xlu0 %1582
      %1584 = vrot.lane.b32.xlu0 %v1331, 6
      %v1585 = vpop.permute.xlu0 %1584
      %1586 = vrot.lane.b32.xlu0 %v1332, 6
      %v1587 = vpop.permute.xlu0 %1586
      %v1604 = vrot.slane %v918, 1
      %v1605 = vsel %vm1394, %v1426, %v1604
      %v1606 = vrot.slane %v920, 1
      %v1607 = vsel %vm1394, %v1604, %v1606
      %1608 = vrot.lane.b32.xlu0 %v1401, 8
      %v1609 = vpop.permute.xlu0 %1608
      %1610 = vrot.lane.b32.xlu0 %v1403, 8
      %v1611 = vpop.permute.xlu0 %1610
      %1612 = vrot.lane.b32.xlu0 %v1405, 8
      %v1613 = vpop.permute.xlu0 %1612
      %1614 = vrot.lane.b32.xlu0 %v1407, 8
      %v1615 = vpop.permute.xlu0 %1614
      %1616 = vrot.lane.b32.xlu0 %v1409, 8
      %v1617 = vpop.permute.xlu0 %1616
      %1618 = vrot.lane.b32.xlu0 %v1411, 8
      %v1619 = vpop.permute.xlu0 %1618
      %1620 = vrot.lane.b32.xlu0 %v1413, 8
      %v1621 = vpop.permute.xlu0 %1620
      %1622 = vrot.lane.b32.xlu0 %v1415, 8
      %v1623 = vpop.permute.xlu0 %1622
      %1624 = vrot.lane.b32.xlu0 %v1417, 8
      %v1625 = vpop.permute.xlu0 %1624
      %1626 = vrot.lane.b32.xlu0 %v1419, 8
      %v1627 = vpop.permute.xlu0 %1626
      %1628 = vrot.lane.b32.xlu0 %v1421, 8
      %v1629 = vpop.permute.xlu0 %1628
      %1630 = vrot.lane.b32.xlu0 %v1423, 8
      %v1631 = vpop.permute.xlu0 %1630
      %1632 = vrot.lane.b32.xlu0 %v1425, 8
      %v1633 = vpop.permute.xlu0 %1632
      %1634 = vrot.lane.b32.xlu0 %v1427, 8
      %v1635 = vpop.permute.xlu0 %1634
      %1636 = vrot.lane.b32.xlu0 %v1605, 8
      %v1637 = vpop.permute.xlu0 %1636
      %1638 = vrot.lane.b32.xlu0 %v1607, 8
      %v1639 = vpop.permute.xlu0 %1638
      %1672 = vrot.lane.b32.xlu0 %v1339, 10
      %v1673 = vpop.permute.xlu0 %1672
      %1674 = vrot.lane.b32.xlu0 %v1340, 10
      %v1675 = vpop.permute.xlu0 %1674
      %1676 = vrot.lane.b32.xlu0 %v1341, 10
      %v1677 = vpop.permute.xlu0 %1676
      %1678 = vrot.lane.b32.xlu0 %v1342, 10
      %v1679 = vpop.permute.xlu0 %1678
      %1680 = vrot.lane.b32.xlu0 %v1343, 10
      %v1681 = vpop.permute.xlu0 %1680
      %1682 = vrot.lane.b32.xlu0 %v1344, 10
      %v1683 = vpop.permute.xlu0 %1682
      %1684 = vrot.lane.b32.xlu0 %v1345, 10
      %v1685 = vpop.permute.xlu0 %1684
      %1686 = vrot.lane.b32.xlu0 %v1346, 10
      %v1687 = vpop.permute.xlu0 %1686
      %1688 = vrot.lane.b32.xlu0 %v1347, 10
      %v1689 = vpop.permute.xlu0 %1688
      %1690 = vrot.lane.b32.xlu0 %v1348, 10
      %v1691 = vpop.permute.xlu0 %1690
      %1692 = vrot.lane.b32.xlu0 %v1349, 10
      %v1693 = vpop.permute.xlu0 %1692
      %1694 = vrot.lane.b32.xlu0 %v1350, 10
      %v1695 = vpop.permute.xlu0 %1694
      %1696 = vrot.lane.b32.xlu0 %v1351, 10
      %v1697 = vpop.permute.xlu0 %1696
      %1698 = vrot.lane.b32.xlu0 %v1352, 10
      %v1699 = vpop.permute.xlu0 %1698
      %1700 = vrot.lane.b32.xlu0 %v1353, 10
      %v1701 = vpop.permute.xlu0 %1700
      %1702 = vrot.lane.b32.xlu0 %v1354, 10
      %v1703 = vpop.permute.xlu0 %1702
      %1736 = vrot.lane.b32.xlu0 %v1355, 12
      %v1737 = vpop.permute.xlu0 %1736
      %1738 = vrot.lane.b32.xlu0 %v1356, 12
      %v1739 = vpop.permute.xlu0 %1738
      %1740 = vrot.lane.b32.xlu0 %v1357, 12
      %v1741 = vpop.permute.xlu0 %1740
      %1742 = vrot.lane.b32.xlu0 %v1358, 12
      %v1743 = vpop.permute.xlu0 %1742
      %1744 = vrot.lane.b32.xlu0 %v1359, 12
      %v1745 = vpop.permute.xlu0 %1744
      %1746 = vrot.lane.b32.xlu0 %v1360, 12
      %v1747 = vpop.permute.xlu0 %1746
      %1748 = vrot.lane.b32.xlu0 %v1361, 12
      %v1749 = vpop.permute.xlu0 %1748
      %1750 = vrot.lane.b32.xlu0 %v1362, 12
      %v1751 = vpop.permute.xlu0 %1750
      %1752 = vrot.lane.b32.xlu0 %v1363, 12
      %v1753 = vpop.permute.xlu0 %1752
      %1754 = vrot.lane.b32.xlu0 %v1364, 12
      %v1755 = vpop.permute.xlu0 %1754
      %1756 = vrot.lane.b32.xlu0 %v1365, 12
      %v1757 = vpop.permute.xlu0 %1756
      %1758 = vrot.lane.b32.xlu0 %v1366, 12
      %v1759 = vpop.permute.xlu0 %1758
      %1760 = vrot.lane.b32.xlu0 %v1367, 12
      %v1761 = vpop.permute.xlu0 %1760
      %1762 = vrot.lane.b32.xlu0 %v1368, 12
      %v1763 = vpop.permute.xlu0 %1762
      %1764 = vrot.lane.b32.xlu0 %v1369, 12
      %v1765 = vpop.permute.xlu0 %1764
      %1766 = vrot.lane.b32.xlu0 %v1370, 12
      %v1767 = vpop.permute.xlu0 %1766
      %v1784 = vrot.slane %v922, 1
      %v1785 = vsel %vm1394, %v1606, %v1784
      %v1786 = vrot.slane %v945, 1
      %v1787 = vsel %vm1394, %v1784, %v1786
      %1788 = vrot.lane.b32.xlu0 %v1405, 14
      %v1789 = vpop.permute.xlu0 %1788
      %1790 = vrot.lane.b32.xlu0 %v1407, 14
      %v1791 = vpop.permute.xlu0 %1790
      %1792 = vrot.lane.b32.xlu0 %v1409, 14
      %v1793 = vpop.permute.xlu0 %1792
      %1794 = vrot.lane.b32.xlu0 %v1411, 14
      %v1795 = vpop.permute.xlu0 %1794
      %1796 = vrot.lane.b32.xlu0 %v1413, 14
      %v1797 = vpop.permute.xlu0 %1796
      %1798 = vrot.lane.b32.xlu0 %v1415, 14
      %v1799 = vpop.permute.xlu0 %1798
      %1800 = vrot.lane.b32.xlu0 %v1417, 14
      %v1801 = vpop.permute.xlu0 %1800
      %1802 = vrot.lane.b32.xlu0 %v1419, 14
      %v1803 = vpop.permute.xlu0 %1802
      %1804 = vrot.lane.b32.xlu0 %v1421, 14
      %v1805 = vpop.permute.xlu0 %1804
      %1806 = vrot.lane.b32.xlu0 %v1423, 14
      %v1807 = vpop.permute.xlu0 %1806
      %1808 = vrot.lane.b32.xlu0 %v1425, 14
      %v1809 = vpop.permute.xlu0 %1808
      %1810 = vrot.lane.b32.xlu0 %v1427, 14
      %v1811 = vpop.permute.xlu0 %1810
      %1812 = vrot.lane.b32.xlu0 %v1605, 14
      %v1813 = vpop.permute.xlu0 %1812
      %1814 = vrot.lane.b32.xlu0 %v1607, 14
      %v1815 = vpop.permute.xlu0 %1814
      %1816 = vrot.lane.b32.xlu0 %v1785, 14
      %v1817 = vpop.permute.xlu0 %1816
      %1818 = vrot.lane.b32.xlu0 %v1787, 14
      %v1819 = vpop.permute.xlu0 %1818
      %1852 = vrot.lane.b32.xlu0 %v1378, 16
      %v1853 = vpop.permute.xlu0 %1852
      %1854 = vrot.lane.b32.xlu0 %v1379, 16
      %v1855 = vpop.permute.xlu0 %1854
      %1856 = vrot.lane.b32.xlu0 %v1380, 16
      %v1857 = vpop.permute.xlu0 %1856
      %1858 = vrot.lane.b32.xlu0 %v1381, 16
      %v1859 = vpop.permute.xlu0 %1858
      %1860 = vrot.lane.b32.xlu0 %v1382, 16
      %v1861 = vpop.permute.xlu0 %1860
      %1862 = vrot.lane.b32.xlu0 %v1383, 16
      %v1863 = vpop.permute.xlu0 %1862
      %1864 = vrot.lane.b32.xlu0 %v1384, 16
      %v1865 = vpop.permute.xlu0 %1864
      %1866 = vrot.lane.b32.xlu0 %v1385, 16
      %v1867 = vpop.permute.xlu0 %1866
      %1868 = vrot.lane.b32.xlu0 %v1386, 16
      %v1869 = vpop.permute.xlu0 %1868
      %1870 = vrot.lane.b32.xlu0 %v1387, 16
      %v1871 = vpop.permute.xlu0 %1870
      %1872 = vrot.lane.b32.xlu0 %v1388, 16
      %v1873 = vpop.permute.xlu0 %1872
      %1874 = vrot.lane.b32.xlu0 %v1389, 16
      %v1875 = vpop.permute.xlu0 %1874
      %1876 = vrot.lane.b32.xlu0 %v1390, 16
      %v1877 = vpop.permute.xlu0 %1876
      %1878 = vrot.lane.b32.xlu0 %v1391, 16
      %v1879 = vpop.permute.xlu0 %1878
      %1880 = vrot.lane.b32.xlu0 %v1392, 16
      %v1881 = vpop.permute.xlu0 %1880
      %1882 = vrot.lane.b32.xlu0 %v1393, 16
      %v1883 = vpop.permute.xlu0 %1882
      %vm1900 = vcmask 15360
      %v1901 = vsel %vm1900, %v1202, %v1429
      %v1902 = vsel %vm1900, %v1203, %v1431
      %v1903 = vsel %vm1900, %v1204, %v1433
      %v1904 = vsel %vm1900, %v1205, %v1435
      %v1905 = vsel %vm1900, %v1206, %v1437
      %v1906 = vsel %vm1900, %v1207, %v1439
      %v1907 = vsel %vm1900, %v1208, %v1441
      %v1908 = vsel %vm1900, %v1209, %v1443
      %v1909 = vsel %vm1900, %v1210, %v1445
      %v1910 = vsel %vm1900, %v1211, %v1447
      %v1911 = vsel %vm1900, %v1212, %v1449
      %v1912 = vsel %vm1900, %v1213, %v1451
      %v1913 = vsel %vm1900, %v1214, %v1453
      %v1914 = vsel %vm1900, %v1215, %v1455
      %v1915 = vsel %vm1900, %v1216, %v1457
      %v1916 = vsel %vm1900, %v1217, %v1459
      %v1917 = vsel %vm472, %v1901, %v1493
      %v1918 = vsel %vm472, %v1902, %v1495
      %v1919 = vsel %vm472, %v1903, %v1497
      %v1920 = vsel %vm472, %v1904, %v1499
      %v1921 = vsel %vm472, %v1905, %v1501
      %v1922 = vsel %vm472, %v1906, %v1503
      %v1923 = vsel %vm472, %v1907, %v1505
      %v1924 = vsel %vm472, %v1908, %v1507
      %v1925 = vsel %vm472, %v1909, %v1509
      %v1926 = vsel %vm472, %v1910, %v1511
      %v1927 = vsel %vm472, %v1911, %v1513
      %v1928 = vsel %vm472, %v1912, %v1515
      %v1929 = vsel %vm472, %v1913, %v1517
      %v1930 = vsel %vm472, %v1914, %v1519
      %v1931 = vsel %vm472, %v1915, %v1521
      %v1932 = vsel %vm472, %v1916, %v1523
      %vm1933 = vcmask 48128
      %v1934 = vsel %vm1933, %v1917, %v1557
      %v1935 = vsel %vm1933, %v1918, %v1559
      %v1936 = vsel %vm1933, %v1919, %v1561
      %v1937 = vsel %vm1933, %v1920, %v1563
      %v1938 = vsel %vm1933, %v1921, %v1565
      %v1939 = vsel %vm1933, %v1922, %v1567
      %v1940 = vsel %vm1933, %v1923, %v1569
      %v1941 = vsel %vm1933, %v1924, %v1571
      %v1942 = vsel %vm1933, %v1925, %v1573
      %v1943 = vsel %vm1933, %v1926, %v1575
      %v1944 = vsel %vm1933, %v1927, %v1577
      %v1945 = vsel %vm1933, %v1928, %v1579
      %v1946 = vsel %vm1933, %v1929, %v1581
      %v1947 = vsel %vm1933, %v1930, %v1583
      %v1948 = vsel %vm1933, %v1931, %v1585
      %v1949 = vsel %vm1933, %v1932, %v1587
      %vm1950 = vcmask 64512
      %v1951 = vsel %vm1950, %v1934, %v1609
      %v1952 = vsel %vm1950, %v1935, %v1611
      %v1953 = vsel %vm1950, %v1936, %v1613
      %v1954 = vsel %vm1950, %v1937, %v1615
      %v1955 = vsel %vm1950, %v1938, %v1617
      %v1956 = vsel %vm1950, %v1939, %v1619
      %v1957 = vsel %vm1950, %v1940, %v1621
      %v1958 = vsel %vm1950, %v1941, %v1623
      %v1959 = vsel %vm1950, %v1942, %v1625
      %v1960 = vsel %vm1950, %v1943, %v1627
      %v1961 = vsel %vm1950, %v1944, %v1629
      %v1962 = vsel %vm1950, %v1945, %v1631
      %v1963 = vsel %vm1950, %v1946, %v1633
      %v1964 = vsel %vm1950, %v1947, %v1635
      %v1965 = vsel %vm1950, %v1948, %v1637
      %v1966 = vsel %vm1950, %v1949, %v1639
      %vm1967 = vcmask 80896
      %v1968 = vsel %vm1967, %v1951, %v1673
      %v1969 = vsel %vm1967, %v1952, %v1675
      %v1970 = vsel %vm1967, %v1953, %v1677
      %v1971 = vsel %vm1967, %v1954, %v1679
      %v1972 = vsel %vm1967, %v1955, %v1681
      %v1973 = vsel %vm1967, %v1956, %v1683
      %v1974 = vsel %vm1967, %v1957, %v1685
      %v1975 = vsel %vm1967, %v1958, %v1687
      %v1976 = vsel %vm1967, %v1959, %v1689
      %v1977 = vsel %vm1967, %v1960, %v1691
      %v1978 = vsel %vm1967, %v1961, %v1693
      %v1979 = vsel %vm1967, %v1962, %v1695
      %v1980 = vsel %vm1967, %v1963, %v1697
      %v1981 = vsel %vm1967, %v1964, %v1699
      %v1982 = vsel %vm1967, %v1965, %v1701
      %v1983 = vsel %vm1967, %v1966, %v1703
      %vm1984 = vcmask 97280
      %v1985 = vsel %vm1984, %v1968, %v1737
      %v1986 = vsel %vm1984, %v1969, %v1739
      %v1987 = vsel %vm1984, %v1970, %v1741
      %v1988 = vsel %vm1984, %v1971, %v1743
      %v1989 = vsel %vm1984, %v1972, %v1745
      %v1990 = vsel %vm1984, %v1973, %v1747
      %v1991 = vsel %vm1984, %v1974, %v1749
      %v1992 = vsel %vm1984, %v1975, %v1751
      %v1993 = vsel %vm1984, %v1976, %v1753
      %v1994 = vsel %vm1984, %v1977, %v1755
      %v1995 = vsel %vm1984, %v1978, %v1757
      %v1996 = vsel %vm1984, %v1979, %v1759
      %v1997 = vsel %vm1984, %v1980, %v1761
      %v1998 = vsel %vm1984, %v1981, %v1763
      %v1999 = vsel %vm1984, %v1982, %v1765
      %v2000 = vsel %vm1984, %v1983, %v1767
      %vm2001 = vcmask 113664
      %v2002 = vsel %vm2001, %v1985, %v1789
      %v2003 = vsel %vm2001, %v1986, %v1791
      %v2004 = vsel %vm2001, %v1987, %v1793
      %v2005 = vsel %vm2001, %v1988, %v1795
      %v2006 = vsel %vm2001, %v1989, %v1797
      %v2007 = vsel %vm2001, %v1990, %v1799
      %v2008 = vsel %vm2001, %v1991, %v1801
      %v2009 = vsel %vm2001, %v1992, %v1803
      %v2010 = vsel %vm2001, %v1993, %v1805
      %v2011 = vsel %vm2001, %v1994, %v1807
      %v2012 = vsel %vm2001, %v1995, %v1809
      %v2013 = vsel %vm2001, %v1996, %v1811
      %v2014 = vsel %vm2001, %v1997, %v1813
      %v2015 = vsel %vm2001, %v1998, %v1815
      %v2016 = vsel %vm2001, %v1999, %v1817
      %v2017 = vsel %vm2001, %v2000, %v1819
      %vm2018 = vcmask 130048
      %v2019 = vsel %vm2018, %v2002, %v1853
      %v2020 = vsel %vm2018, %v2003, %v1855
      %v2021 = vsel %vm2018, %v2004, %v1857
      %v2022 = vsel %vm2018, %v2005, %v1859
      %v2023 = vsel %vm2018, %v2006, %v1861
      %v2024 = vsel %vm2018, %v2007, %v1863
      %v2025 = vsel %vm2018, %v2008, %v1865
      %v2026 = vsel %vm2018, %v2009, %v1867
      %v2027 = vsel %vm2018, %v2010, %v1869
      %v2028 = vsel %vm2018, %v2011, %v1871
      %v2029 = vsel %vm2018, %v2012, %v1873
      %v2030 = vsel %vm2018, %v2013, %v1875
      %v2031 = vsel %vm2018, %v2014, %v1877
      %v2032 = vsel %vm2018, %v2015, %v1879
      %v2033 = vsel %vm2018, %v2016, %v1881
      %v2034 = vsel %vm2018, %v2017, %v1883
      %v2035 = vld [vmem:[%s5] sm:$0xff]
      %v2036 = vld [vmem:[%s5 + $0x8] sm:$0xff]
      %v2037 = vld [vmem:[%s5 + $0x10] sm:$0x3]
      %v2038 = vld [vmem:[%s6] sm:$0x1]
      %v2040 = vperm.slane %v2038, 0
      %vm2042 = vcmask 146432
      %v2044 = vsel %vm2042, %v2019, 0
      %v2047 = vsel %vm2042, %v2020, 0
      %v2050 = vsel %vm2042, %v2021, 0
      %v2053 = vsel %vm2042, %v2022, 0
      %v2056 = vsel %vm2042, %v2023, 0
      %v2059 = vsel %vm2042, %v2024, 0
      %v2062 = vsel %vm2042, %v2025, 0
      %v2065 = vsel %vm2042, %v2026, 0
      %v2068 = vsel %vm2042, %v2027, 0
      %v2071 = vsel %vm2042, %v2028, 0
      %v2074 = vsel %vm2042, %v2029, 0
      %v2077 = vsel %vm2042, %v2030, 0
      %v2080 = vsel %vm2042, %v2031, 0
      %v2083 = vsel %vm2042, %v2032, 0
      %v2086 = vsel %vm2042, %v2033, 0
      %v2089 = vsel %vm2042, %v2034, 0
      %vm2091 = vcmask 1041408
      %v2093 = vsel %vm2091, %v2037, 0
      %2095 = vmatpush.msra.mxu0 0.0
      %2096 = vmatpush.msra.mxu0 0.0
      %2097 = vmatpush.msra.mxu0 0.0
      %2098 = vmatpush.msra.mxu0 0.0
      %2099 = vmatpush.msra.mxu0 0.0
      %2100 = vmatpush.msra.mxu0 0.0
      %2101 = vmatpush.msra.mxu0 0.0
      %2102 = vmatpush.msra.mxu0 0.0
      %2103 = vmatpush.msra.mxu0 0.0
      %2104 = vmatpush.msra.mxu0 0.0
      %2105 = vmatpush.msra.mxu0 0.0
      %2106 = vmatpush.msra.mxu0 0.0
      %2107 = vmatpush.msra.mxu0 0.0
      %2108 = vmatpush.msra.mxu0 %v2093
      %2109 = vmatpush.msra.mxu0 %v2036
      %2110 = vmatpush.msra.mxu0 %v2035
      %2111 = vmatmul.f32.gmra.mxu0 %v2044
      %v2112 = vpop.f32.mrf.mxu0
      %v2113 = vadd.f32 %v2040, %v2112
      %2114 = vmatmul.f32.gmra.mxu0 %v2047
      %v2115 = vpop.f32.mrf.mxu0
      %v2116 = vadd.f32 %v2040, %v2115
      %2117 = vmatmul.f32.gmra.mxu0 %v2050
      %v2118 = vpop.f32.mrf.mxu0
      %v2119 = vadd.f32 %v2040, %v2118
      %2120 = vmatmul.f32.gmra.mxu0 %v2053
      %v2121 = vpop.f32.mrf.mxu0
      %v2122 = vadd.f32 %v2040, %v2121
      %2123 = vmatmul.f32.gmra.mxu0 %v2056
      %v2124 = vpop.f32.mrf.mxu0
      %v2125 = vadd.f32 %v2040, %v2124
      %2126 = vmatmul.f32.gmra.mxu0 %v2059
      %v2127 = vpop.f32.mrf.mxu0
      %v2128 = vadd.f32 %v2040, %v2127
      %2129 = vmatmul.f32.gmra.mxu0 %v2062
      %v2130 = vpop.f32.mrf.mxu0
      %v2131 = vadd.f32 %v2040, %v2130
      %2132 = vmatmul.f32.gmra.mxu0 %v2065
      %v2133 = vpop.f32.mrf.mxu0
      %v2134 = vadd.f32 %v2040, %v2133
      %2135 = vmatmul.f32.gmra.mxu0 %v2068
      %v2136 = vpop.f32.mrf.mxu0
      %v2137 = vadd.f32 %v2040, %v2136
      %2138 = vmatmul.f32.gmra.mxu0 %v2071
      %v2139 = vpop.f32.mrf.mxu0
      %v2140 = vadd.f32 %v2040, %v2139
      %2141 = vmatmul.f32.gmra.mxu0 %v2074
      %v2142 = vpop.f32.mrf.mxu0
      %v2143 = vadd.f32 %v2040, %v2142
      %2144 = vmatmul.f32.gmra.mxu0 %v2077
      %v2145 = vpop.f32.mrf.mxu0
      %v2146 = vadd.f32 %v2040, %v2145
      %2147 = vmatmul.f32.gmra.mxu0 %v2080
      %v2148 = vpop.f32.mrf.mxu0
      %v2149 = vadd.f32 %v2040, %v2148
      %2150 = vmatmul.f32.gmra.mxu0 %v2083
      %v2151 = vpop.f32.mrf.mxu0
      %v2152 = vadd.f32 %v2040, %v2151
      %2153 = vmatmul.f32.gmra.mxu0 %v2086
      %v2154 = vpop.f32.mrf.mxu0
      %v2155 = vadd.f32 %v2040, %v2154
      %2156 = vmatmul.f32.gmra.mxu0 %v2089
      %v2157 = vpop.f32.mrf.mxu0
      %v2158 = vadd.f32 %v2040, %v2157
      %2159 = vdwg.mxu0
      %vm2160 = vcmp.gt.f32.partialorder %v2113, 0.0
      %vm2161 = vcmp.gt.f32.partialorder %v2116, 0.0
      %vm2162 = vcmp.gt.f32.partialorder %v2119, 0.0
      %vm2163 = vcmp.gt.f32.partialorder %v2122, 0.0
      %vm2164 = vcmp.gt.f32.partialorder %v2125, 0.0
      %vm2165 = vcmp.gt.f32.partialorder %v2128, 0.0
      %vm2166 = vcmp.gt.f32.partialorder %v2131, 0.0
      %vm2167 = vcmp.gt.f32.partialorder %v2134, 0.0
      %vm2168 = vcmp.gt.f32.partialorder %v2137, 0.0
      %vm2169 = vcmp.gt.f32.partialorder %v2140, 0.0
      %vm2170 = vcmp.gt.f32.partialorder %v2143, 0.0
      %vm2171 = vcmp.gt.f32.partialorder %v2146, 0.0
      %vm2172 = vcmp.gt.f32.partialorder %v2149, 0.0
      %vm2173 = vcmp.gt.f32.partialorder %v2152, 0.0
      %vm2174 = vcmp.gt.f32.partialorder %v2155, 0.0
      %vm2175 = vcmp.gt.f32.partialorder %v2158, 0.0
      %v2176 = vmul.f32 %v2113, 0.01
      %v2177 = vmul.f32 %v2116, 0.01
      %v2178 = vmul.f32 %v2119, 0.01
      %v2179 = vmul.f32 %v2122, 0.01
      %v2180 = vmul.f32 %v2125, 0.01
      %v2181 = vmul.f32 %v2128, 0.01
      %v2182 = vmul.f32 %v2131, 0.01
      %v2183 = vmul.f32 %v2134, 0.01
      %v2184 = vmul.f32 %v2137, 0.01
      %v2185 = vmul.f32 %v2140, 0.01
      %v2186 = vmul.f32 %v2143, 0.01
      %v2187 = vmul.f32 %v2146, 0.01
      %v2188 = vmul.f32 %v2149, 0.01
      %v2189 = vmul.f32 %v2152, 0.01
      %v2190 = vmul.f32 %v2155, 0.01
      %v2191 = vmul.f32 %v2158, 0.01
      %v2192 = vsel %vm2160, %v2113, %v2176
      %v2193 = vsel %vm2161, %v2116, %v2177
      %v2194 = vsel %vm2162, %v2119, %v2178
      %v2195 = vsel %vm2163, %v2122, %v2179
      %v2196 = vsel %vm2164, %v2125, %v2180
      %v2197 = vsel %vm2165, %v2128, %v2181
      %v2198 = vsel %vm2166, %v2131, %v2182
      %v2199 = vsel %vm2167, %v2134, %v2183
      %v2200 = vsel %vm2168, %v2137, %v2184
      %v2201 = vsel %vm2169, %v2140, %v2185
      %v2202 = vsel %vm2170, %v2143, %v2186
      %v2203 = vsel %vm2171, %v2146, %v2187
      %v2204 = vsel %vm2172, %v2149, %v2188
      %v2205 = vsel %vm2173, %v2152, %v2189
      %v2206 = vsel %vm2174, %v2155, %v2190
      %v2207 = vsel %vm2175, %v2158, %v2191
      %v2208 = vadd.f32 %v447, %v2192
      %v2209 = vadd.f32 %v448, %v2193
      %v2210 = vadd.f32 %v449, %v2194
      %v2211 = vadd.f32 %v450, %v2195
      %v2212 = vadd.f32 %v451, %v2196
      %v2213 = vadd.f32 %v452, %v2197
      %v2214 = vadd.f32 %v453, %v2198
      %v2215 = vadd.f32 %v454, %v2199
      %v2216 = vadd.f32 %v455, %v2200
      %v2217 = vadd.f32 %v456, %v2201
      %v2218 = vadd.f32 %v457, %v2202
      %v2219 = vadd.f32 %v458, %v2203
      %v2220 = vadd.f32 %v459, %v2204
      %v2221 = vadd.f32 %v460, %v2205
      %v2222 = vadd.f32 %v461, %v2206
      %v2223 = vadd.f32 %v462, %v2207
      %2224 = vst.msk [vmem:[%s445] sm:$0xff] %vm472, %v2208
      %2225 = vst.msk [vmem:[%s445 + $0x8] sm:$0xff] %vm472, %v2209
      %2226 = vst.msk [vmem:[%s445 + $0x10] sm:$0xff] %vm472, %v2210
      %2227 = vst.msk [vmem:[%s445 + $0x18] sm:$0xff] %vm472, %v2211
      %2228 = vst.msk [vmem:[%s445 + $0x20] sm:$0xff] %vm472, %v2212
      %2229 = vst.msk [vmem:[%s445 + $0x28] sm:$0xff] %vm472, %v2213
      %2230 = vst.msk [vmem:[%s445 + $0x30] sm:$0xff] %vm472, %v2214
      %2231 = vst.msk [vmem:[%s445 + $0x38] sm:$0xff] %vm472, %v2215
      %2232 = vst.msk [vmem:[%s445 + $0x40] sm:$0xff] %vm472, %v2216
      %2233 = vst.msk [vmem:[%s445 + $0x48] sm:$0xff] %vm472, %v2217
      %2234 = vst.msk [vmem:[%s445 + $0x50] sm:$0xff] %vm472, %v2218
      %2235 = vst.msk [vmem:[%s445 + $0x58] sm:$0xff] %vm472, %v2219
      %2236 = vst.msk [vmem:[%s445 + $0x60] sm:$0xff] %vm472, %v2220
      %2237 = vst.msk [vmem:[%s445 + $0x68] sm:$0xff] %vm472, %v2221
      %2238 = vst.msk [vmem:[%s445 + $0x70] sm:$0xff] %vm472, %v2222
      %2239 = vst.msk [vmem:[%s445 + $0x78] sm:$0xff] %vm472, %v2223
      %s2240 = smul.u32 8, %s23
      %p2241 = scmp.lt.s32.totalorder %s22, 1
      %s2242 = scalar_select %p2241, %s22, 1
      %p2243 = scmp.lt.s32.totalorder %s2240, 15
      %s2244 = scalar_select %p2243, %s2240, 15
      %s2245 = smul.addr %s2244, 2
      %s2246 = smul.addr %s2242, 32
      %s2247 = sadd.s32 %s2245, %s2246
      %s2248 = smul.addr %s2247, 8
      %s2249 = scalar_lea.vmem %s7, %s2248
      // Predicated region
      $region49: #{residual_layer_nhwc.1} parent=47 // pred_check
        %p2250 = pneg %p234
      $region50: #{residual_layer_nhwc.1} parent=47 // pred_check_branch
        %2252 = sbr.rel (%p2250) target = $region52
      $region51: #{residual_layer_nhwc.1} parent=47 // pred_region
        %s2253 = smul.u32 8, %s23
      $region52: #{residual_layer_nhwc.1} parent=47 // pred_fallthru
        _
    $region48: #{residual_layer_nhwc.1} parent=5 // pred_fallthru
      _
    %p2254 = scmp.le.s32.totalorder 2, %s13
    // Predicated region
    $region53: #{residual_layer_nhwc.1} parent=5 // pred_check
      %p2255 = pneg %p2254
    $region54: #{residual_layer_nhwc.1} parent=5 // pred_check_branch
      %2257 = sbr.rel (%p2255) target = $region56
    $region55: #{residual_layer_nhwc.1} parent=5 // pred_region
      %s2258 = ssub.s32 %s13, 2
      // Predicated region
      $region57: #{residual_layer_nhwc.1} parent=55 // pred_check
        %p2259 = pneg %p240
      $region58: #{residual_layer_nhwc.1} parent=55 // pred_check_branch
        %2261 = sbr.rel (%p2259) target = $region60
      $region59: #{residual_layer_nhwc.1} parent=55 // pred_region
        %s2262 = smul.u32 8, %s25
        %p2263 = scmp.lt.s32.totalorder %s24, 1
        %s2264 = scalar_select %p2263, %s24, 1
        %p2265 = scmp.lt.s32.totalorder %s2262, 15
        %s2266 = scalar_select %p2265, %s2262, 15
        %s2267 = smul.addr %s2266, 2
        %s2268 = smul.addr %s2264, 32
        %s2269 = sadd.s32 %s2267, %s2268
        %s2270 = smul.addr %s2269, 8
        %s2271 = scalar_lea.vmem %s7, %s2270
      $region60: #{residual_layer_nhwc.1} parent=55 // pred_fallthru
        _
    $region56: #{residual_layer_nhwc.1} parent=5 // pred_fallthru
      _
  $region6: #{residual_layer_nhwc.1} parent=0 // loop_footer
    %s17 = sadd.s32 1, %s13
  $region7: #{residual_layer_nhwc.1} parent=0 // loop_footer_branch
    %12 = sbr.rel target = $region3
  $region8: #{residual_layer_nhwc.1} parent=0 // loop_exit
    _

</llo_original>
